<compile_context>
chip_gen: v5e
topology: v5e:2x2
jax: 0.10.0
libtpu: 0.0.40
codegen_flags: <defaults>
</compile_context>

<pallas_src>
import jax
import jax.numpy as jnp
from jax.experimental import pallas as pl
from jax.experimental.pallas import tpu as pltpu


def _sigmoid(x):
    # Manual formulation (exp + divide) to keep the lowering trivially supported.
    return 1.0 / (1.0 + jnp.exp(-x))


# ----------------------------- Pallas kernel -------------------------------

def _hybrid_fusion_kernel(
    img_ref,     # [1, C, TD, H, TW]  VMEM  native NCDHW slab of x['image']
    slo_ref,     # [1, C, TD, 1, TW]  VMEM  native slab of the 2D modality
    wproj_ref,   # [H, 1]             VMEM  3D->2D depth-projection weights
    wof_ref,     # [C, F]             SMEM  folded (wo @ wf_oct)
    wsf_ref,     # [C, F]             SMEM  folded (ws @ wf_slo)
    bf_ref,      # [F]                SMEM  folded fusion bias
    wdec_ref,    # [F, K]             SMEM  2D decode head
    wskip_ref,   # [C, K]             SMEM  3D skip connection
    bdec_ref,    # [K]                SMEM  decode bias
    out_ref,     # [1, K, TD, H, TW]  VMEM  sigmoid probabilities
):
    _, C, TD, H, TW = img_ref.shape
    K = out_ref.shape[1]
    F = wdec_ref.shape[0]

    # Depth-projection weights, broadcast once (hoisted out of the loops).
    wpb = jnp.broadcast_to(
        wproj_ref[...].astype(jnp.float32)[None, :, :], (TD, H, TW))

    xs, projs, slos = [], [], []
    for c in range(C):
        xc = img_ref[0, c, :, :, :].astype(jnp.float32)          # [TD, H, TW]
        xs.append(xc)
        # 3D -> 2D weighted projection over the depth (H) axis.
        projs.append(jnp.sum(xc * wpb, axis=1))                   # [TD, TW]
        slos.append(slo_ref[0, c, :, 0, :].astype(jnp.float32))   # [TD, TW]

    # fused = relu(proj @ Wo' + slo @ Ws' + b')   (channel-unrolled VPU MACs)
    fused = []
    for f in range(F):
        acc = wof_ref[0, f] * projs[0] + wsf_ref[0, f] * slos[0]
        for c in range(1, C):
            acc = acc + wof_ref[c, f] * projs[c] + wsf_ref[c, f] * slos[c]
        fused.append(jnp.maximum(acc + bf_ref[f], 0.0))           # [TD, TW]

    # decode: 2D head broadcast over depth (H) + per-voxel 3D skip, + sigmoid.
    for k in range(K):
        dec = bdec_ref[k] + wdec_ref[0, k] * fused[0]
        for f in range(1, F):
            dec = dec + wdec_ref[f, k] * fused[f]                 # [TD, TW]
        skip = wskip_ref[0, k] * xs[0]
        for c in range(1, C):
            skip = skip + wskip_ref[c, k] * xs[c]                 # [TD, H, TW]
        logits = dec[:, None, :] + skip                           # [TD, H, TW]
        out_ref[0, k, :, :, :] = _sigmoid(logits).astype(out_ref.dtype)


# ------------------------------ tiling helpers ------------------------------

def _pick_w_tile(w, cap=512):
    """Lane tile: full W when small / not 128-aligned, else a big 128-multiple."""
    if w % 128 != 0 or w <= cap:
        return w
    tw = cap
    while w % tw:
        tw -= 128
    return tw


def _pick_d_tile(b, d, n_w_tiles, per_d_bytes, target_bytes=2 << 20,
                 min_steps=16):
    """Grow the D-block toward ~target bytes/step but keep >= min_steps grid
    steps so both v7x TensorCores (and their pipelines) stay busy."""
    best = 1
    for td in range(1, d + 1):
        if d % td:
            continue
        steps = b * (d // td) * n_w_tiles
        if td * per_d_bytes <= target_bytes and (steps >= min_steps or td == 1):
            best = td
    return best


# ------------------------------ wrapper ------------------------------------

def fpn_hybrid_fusion_forward(x, params, *, fusion_modality="slo",
                              target_block_bytes=2 << 20):
    """x: dict with 'image' [B,C,D,H,W] and fusion modality [B,C,D,1,W]."""
    image = x["image"]
    comp = x[fusion_modality]
    b, c, d, h, w = image.shape
    f = params["wdec"].shape[0]
    k = params["wdec"].shape[-1]

    # --- fold the 1x1-conv chain offline (exact algebraic identity) --------
    wof = params["wo"] @ params["wf_oct"]                           # [C, F]
    wsf = params["ws"] @ params["wf_slo"]                           # [C, F]
    bfold = (params["bo"] @ params["wf_oct"]
             + params["bs"] @ params["wf_slo"] + params["bf"])[0]   # [F]
    wproj = params["wproj"].reshape(h, 1)                           # [H, 1]
    wdec = params["wdec"]                                           # [F, K]
    wskip = params["wskip"]                                         # [C, K]
    bdec = params["bdec"][0]                                        # [K]

    # --- tile selection ------------------------------------------------------
    itemsize = jnp.dtype(image.dtype).itemsize
    tw = _pick_w_tile(w)
    per_d_bytes = (c + k) * h * tw * itemsize
    td = _pick_d_tile(b, d, w // tw, per_d_bytes, target_block_bytes)
    grid = (b, d // td, w // tw)

    smem = pl.BlockSpec(memory_space=pltpu.MemorySpace.SMEM)
    in_specs = [
        pl.BlockSpec((1, c, td, h, tw), lambda bi, di, wi: (bi, 0, di, 0, wi)),
        pl.BlockSpec((1, c, td, 1, tw), lambda bi, di, wi: (bi, 0, di, 0, wi)),
        pl.BlockSpec((h, 1), lambda bi, di, wi: (0, 0)),
        smem, smem, smem, smem, smem, smem,
    ]
    out_specs = pl.BlockSpec((1, k, td, h, tw),
                             lambda bi, di, wi: (bi, 0, di, 0, wi))

    seg = pl.pallas_call(
        _hybrid_fusion_kernel,
        out_shape=jax.ShapeDtypeStruct((b, k, d, h, w), jnp.float32),
        grid=grid,
        in_specs=in_specs,
        out_specs=out_specs,
        compiler_params=pltpu.CompilerParams(
            dimension_semantics=("parallel", "parallel", "parallel")),
    )(image, comp, wproj, wof, wsf, bfold, wdec, wskip, bdec)

    return {"prediction": seg}


# --------------------------- pure-JAX reference ------------------------------

def _reference_forward(x, params):
    """Mirrors the module: permute -> representative net -> permute -> sigmoid."""
    image = x["image"].astype(jnp.float32)
    oct = jnp.transpose(image, (0, 1, 2, 4, 3))                 # [B,C,D,W,H]
    slo = x["slo"].astype(jnp.float32)[:, :, :, 0, :]           # [B,C,D,W]

    proj = jnp.einsum("bcdwh,h->bcdw", oct, params["wproj"][0])
    feat_o = jnp.einsum("bcdw,cf->bdwf", proj, params["wo"]) + params["bo"][0]
    feat_s = jnp.einsum("bcdw,cf->bdwf", slo, params["ws"]) + params["bs"][0]
    fused = jax.nn.relu(feat_o @ params["wf_oct"]
                        + feat_s @ params["wf_slo"] + params["bf"][0])
    dec2d = fused @ params["wdec"]                               # [B,D,W,K]
    skip = jnp.einsum("bcdwh,ck->bdwhk", oct, params["wskip"])
    logits = dec2d[:, :, :, None, :] + skip + params["bdec"][0]  # [B,D,W,H,K]
    oct_seg = jnp.transpose(logits, (0, 4, 1, 2, 3))             # [B,K,D,W,H]
    return jax.nn.sigmoid(jnp.transpose(oct_seg, (0, 1, 2, 4, 3)))  # [B,K,D,H,W]


# --------------------------- deterministic params ---------------------------

def init_params(key, *, c, h, f, k):
    keys = jax.random.split(key, 11)
    scale = 0.1
    names_shapes = [
        ("wproj", (1, h)),
        ("wo", (c, f)), ("bo", (1, f)),
        ("ws", (c, f)), ("bs", (1, f)),
        ("wf_oct", (f, f)), ("wf_slo", (f, f)), ("bf", (1, f)),
        ("wdec", (f, k)), ("wskip", (c, k)), ("bdec", (1, k)),
    ]
    return {name: scale * jax.random.normal(kk, shape, dtype=jnp.float32)
            for kk, (name, shape) in zip(keys, names_shapes)}


if __name__ == "__main__":
    B, C, D, H, W = 2, 4, 8, 16, 16
    F, K = 8, 3

    root = jax.random.PRNGKey(0)
    k_img, k_slo, k_par = jax.random.split(root, 3)

    x = {
        "image": jax.random.normal(k_img, (B, C, D, H, W), dtype=jnp.float32),
        "slo": jax.random.normal(k_slo, (B, C, D, 1, W), dtype=jnp.float32),
    }
    params = init_params(k_par, c=C, h=H, f=F, k=K)

    out = fpn_hybrid_fusion_forward(x, params)
    pred = jax.block_until_ready(out["prediction"])

    assert pred.shape == (B, K, D, H, W), pred.shape
    assert bool(jnp.all(jnp.isfinite(pred)))
    assert bool(jnp.all((pred >= 0.0) & (pred <= 1.0)))  # sigmoid range

    ref = _reference_forward(x, params)
    max_err = float(jnp.max(jnp.abs(pred - ref)))
    assert bool(jnp.allclose(pred, ref, atol=1e-5, rtol=1e-5)), max_err

    print("KERNEL_OK")
</pallas_src>

<mosaic_0001>
module attributes {stable_mosaic.version = 11 : i64} {
  func.func @_hybrid_fusion_kernel(%arg0: i32, %arg1: i32, %arg2: i32, %arg3: memref<1x4x1x16x16xf32, #tpu.memory_space<vmem>>, %arg4: memref<1x4x1x1x16xf32, #tpu.memory_space<vmem>>, %arg5: memref<16x1xf32, #tpu.memory_space<vmem>>, %arg6: memref<4x8xf32, #tpu.memory_space<smem>>, %arg7: memref<4x8xf32, #tpu.memory_space<smem>>, %arg8: memref<8xf32, #tpu.memory_space<smem>>, %arg9: memref<8x3xf32, #tpu.memory_space<smem>>, %arg10: memref<4x3xf32, #tpu.memory_space<smem>>, %arg11: memref<3xf32, #tpu.memory_space<smem>>, %arg12: memref<1x3x1x16x16xf32, #tpu.memory_space<vmem>>) attributes {dimension_semantics = [#tpu.dimension_semantics<parallel>, #tpu.dimension_semantics<parallel>, #tpu.dimension_semantics<parallel>], iteration_bounds = array<i64: 2, 8, 1>, scalar_prefetch = 0 : i64, scratch_operands = 0 : i64, tpu.core_type = #tpu.core_type<tc>, window_params = [{transform_indices = @transform_0, window_bounds = array<i64: 1, 4, 1, 16, 16>}, {transform_indices = @transform_1, window_bounds = array<i64: 1, 4, 1, 1, 16>}, {pipeline_mode = #tpu.pipeline_mode<synchronous>, transform_indices = @transform_2, window_bounds = array<i64: 16, 1>}, {transform_indices = @transform_3, window_bounds = array<i64: 4, 8>}, {transform_indices = @transform_4, window_bounds = array<i64: 4, 8>}, {transform_indices = @transform_5, window_bounds = array<i64: 8>}, {transform_indices = @transform_6, window_bounds = array<i64: 8, 3>}, {transform_indices = @transform_7, window_bounds = array<i64: 4, 3>}, {transform_indices = @transform_8, window_bounds = array<i64: 3>}, {transform_indices = @transform_9, window_bounds = array<i64: 1, 3, 1, 16, 16>}]} {
    %c0 = arith.constant 0 : index
    %c0_0 = arith.constant 0 : index
    %0 = vector.load %arg5[%c0, %c0_0] : memref<16x1xf32, #tpu.memory_space<vmem>>, vector<16x1xf32>
    %1 = vector.shape_cast %0 : vector<16x1xf32> to vector<1x16x1xf32>
    %2 = vector.shape_cast %1 : vector<1x16x1xf32> to vector<1x16x1xf32>
    %3 = vector.broadcast %2 : vector<1x16x1xf32> to vector<1x16x16xf32>
    %c0_1 = arith.constant 0 : index
    %c0_2 = arith.constant 0 : index
    %c0_3 = arith.constant 0 : index
    %c0_4 = arith.constant 0 : index
    %c0_5 = arith.constant 0 : index
    %4 = vector.load %arg3[%c0_1, %c0_2, %c0_3, %c0_4, %c0_5] : memref<1x4x1x16x16xf32, #tpu.memory_space<vmem>>, vector<1x1x1x16x16xf32>
    %5 = vector.shape_cast %4 : vector<1x1x1x16x16xf32> to vector<1x16x16xf32>
    %6 = arith.mulf %5, %3 : vector<1x16x16xf32>
    %cst = arith.constant dense<0.000000e+00> : vector<1x16xf32>
    %7 = vector.multi_reduction <add>, %6, %cst [1] : vector<1x16x16xf32> to vector<1x16xf32>
    %c0_6 = arith.constant 0 : index
    %c0_7 = arith.constant 0 : index
    %c0_8 = arith.constant 0 : index
    %c0_9 = arith.constant 0 : index
    %c0_10 = arith.constant 0 : index
    %8 = vector.load %arg4[%c0_6, %c0_7, %c0_8, %c0_9, %c0_10] : memref<1x4x1x1x16xf32, #tpu.memory_space<vmem>>, vector<1x1x1x1x16xf32>
    %9 = vector.shape_cast %8 : vector<1x1x1x1x16xf32> to vector<1x16xf32>
    %c0_11 = arith.constant 0 : index
    %c1 = arith.constant 1 : index
    %c0_12 = arith.constant 0 : index
    %c0_13 = arith.constant 0 : index
    %c0_14 = arith.constant 0 : index
    %10 = vector.load %arg3[%c0_11, %c1, %c0_12, %c0_13, %c0_14] : memref<1x4x1x16x16xf32, #tpu.memory_space<vmem>>, vector<1x1x1x16x16xf32>
    %11 = vector.shape_cast %10 : vector<1x1x1x16x16xf32> to vector<1x16x16xf32>
    %12 = arith.mulf %11, %3 : vector<1x16x16xf32>
    %cst_15 = arith.constant dense<0.000000e+00> : vector<1x16xf32>
    %13 = vector.multi_reduction <add>, %12, %cst_15 [1] : vector<1x16x16xf32> to vector<1x16xf32>
    %c0_16 = arith.constant 0 : index
    %c1_17 = arith.constant 1 : index
    %c0_18 = arith.constant 0 : index
    %c0_19 = arith.constant 0 : index
    %c0_20 = arith.constant 0 : index
    %14 = vector.load %arg4[%c0_16, %c1_17, %c0_18, %c0_19, %c0_20] : memref<1x4x1x1x16xf32, #tpu.memory_space<vmem>>, vector<1x1x1x1x16xf32>
    %15 = vector.shape_cast %14 : vector<1x1x1x1x16xf32> to vector<1x16xf32>
    %c0_21 = arith.constant 0 : index
    %c2 = arith.constant 2 : index
    %c0_22 = arith.constant 0 : index
    %c0_23 = arith.constant 0 : index
    %c0_24 = arith.constant 0 : index
    %16 = vector.load %arg3[%c0_21, %c2, %c0_22, %c0_23, %c0_24] : memref<1x4x1x16x16xf32, #tpu.memory_space<vmem>>, vector<1x1x1x16x16xf32>
    %17 = vector.shape_cast %16 : vector<1x1x1x16x16xf32> to vector<1x16x16xf32>
    %18 = arith.mulf %17, %3 : vector<1x16x16xf32>
    %cst_25 = arith.constant dense<0.000000e+00> : vector<1x16xf32>
    %19 = vector.multi_reduction <add>, %18, %cst_25 [1] : vector<1x16x16xf32> to vector<1x16xf32>
    %c0_26 = arith.constant 0 : index
    %c2_27 = arith.constant 2 : index
    %c0_28 = arith.constant 0 : index
    %c0_29 = arith.constant 0 : index
    %c0_30 = arith.constant 0 : index
    %20 = vector.load %arg4[%c0_26, %c2_27, %c0_28, %c0_29, %c0_30] : memref<1x4x1x1x16xf32, #tpu.memory_space<vmem>>, vector<1x1x1x1x16xf32>
    %21 = vector.shape_cast %20 : vector<1x1x1x1x16xf32> to vector<1x16xf32>
    %c0_31 = arith.constant 0 : index
    %c3 = arith.constant 3 : index
    %c0_32 = arith.constant 0 : index
    %c0_33 = arith.constant 0 : index
    %c0_34 = arith.constant 0 : index
    %22 = vector.load %arg3[%c0_31, %c3, %c0_32, %c0_33, %c0_34] : memref<1x4x1x16x16xf32, #tpu.memory_space<vmem>>, vector<1x1x1x16x16xf32>
    %23 = vector.shape_cast %22 : vector<1x1x1x16x16xf32> to vector<1x16x16xf32>
    %24 = arith.mulf %23, %3 : vector<1x16x16xf32>
    %cst_35 = arith.constant dense<0.000000e+00> : vector<1x16xf32>
    %25 = vector.multi_reduction <add>, %24, %cst_35 [1] : vector<1x16x16xf32> to vector<1x16xf32>
    %c0_36 = arith.constant 0 : index
    %c3_37 = arith.constant 3 : index
    %c0_38 = arith.constant 0 : index
    %c0_39 = arith.constant 0 : index
    %c0_40 = arith.constant 0 : index
    %26 = vector.load %arg4[%c0_36, %c3_37, %c0_38, %c0_39, %c0_40] : memref<1x4x1x1x16xf32, #tpu.memory_space<vmem>>, vector<1x1x1x1x16xf32>
    %27 = vector.shape_cast %26 : vector<1x1x1x1x16xf32> to vector<1x16xf32>
    %c0_41 = arith.constant 0 : index
    %c0_42 = arith.constant 0 : index
    %28 = memref.load %arg6[%c0_41, %c0_42] : memref<4x8xf32, #tpu.memory_space<smem>>
    %29 = vector.broadcast %28 : f32 to vector<1x16xf32>
    %30 = arith.mulf %29, %7 : vector<1x16xf32>
    %c0_43 = arith.constant 0 : index
    %c0_44 = arith.constant 0 : index
    %31 = memref.load %arg7[%c0_43, %c0_44] : memref<4x8xf32, #tpu.memory_space<smem>>
    %32 = vector.broadcast %31 : f32 to vector<1x16xf32>
    %33 = arith.mulf %32, %9 : vector<1x16xf32>
    %34 = arith.addf %30, %33 : vector<1x16xf32>
    %c1_45 = arith.constant 1 : index
    %c0_46 = arith.constant 0 : index
    %35 = memref.load %arg6[%c1_45, %c0_46] : memref<4x8xf32, #tpu.memory_space<smem>>
    %36 = vector.broadcast %35 : f32 to vector<1x16xf32>
    %37 = arith.mulf %36, %13 : vector<1x16xf32>
    %38 = arith.addf %34, %37 : vector<1x16xf32>
    %c1_47 = arith.constant 1 : index
    %c0_48 = arith.constant 0 : index
    %39 = memref.load %arg7[%c1_47, %c0_48] : memref<4x8xf32, #tpu.memory_space<smem>>
    %40 = vector.broadcast %39 : f32 to vector<1x16xf32>
    %41 = arith.mulf %40, %15 : vector<1x16xf32>
    %42 = arith.addf %38, %41 : vector<1x16xf32>
    %c2_49 = arith.constant 2 : index
    %c0_50 = arith.constant 0 : index
    %43 = memref.load %arg6[%c2_49, %c0_50] : memref<4x8xf32, #tpu.memory_space<smem>>
    %44 = vector.broadcast %43 : f32 to vector<1x16xf32>
    %45 = arith.mulf %44, %19 : vector<1x16xf32>
    %46 = arith.addf %42, %45 : vector<1x16xf32>
    %c2_51 = arith.constant 2 : index
    %c0_52 = arith.constant 0 : index
    %47 = memref.load %arg7[%c2_51, %c0_52] : memref<4x8xf32, #tpu.memory_space<smem>>
    %48 = vector.broadcast %47 : f32 to vector<1x16xf32>
    %49 = arith.mulf %48, %21 : vector<1x16xf32>
    %50 = arith.addf %46, %49 : vector<1x16xf32>
    %c3_53 = arith.constant 3 : index
    %c0_54 = arith.constant 0 : index
    %51 = memref.load %arg6[%c3_53, %c0_54] : memref<4x8xf32, #tpu.memory_space<smem>>
    %52 = vector.broadcast %51 : f32 to vector<1x16xf32>
    %53 = arith.mulf %52, %25 : vector<1x16xf32>
    %54 = arith.addf %50, %53 : vector<1x16xf32>
    %c3_55 = arith.constant 3 : index
    %c0_56 = arith.constant 0 : index
    %55 = memref.load %arg7[%c3_55, %c0_56] : memref<4x8xf32, #tpu.memory_space<smem>>
    %56 = vector.broadcast %55 : f32 to vector<1x16xf32>
    %57 = arith.mulf %56, %27 : vector<1x16xf32>
    %58 = arith.addf %54, %57 : vector<1x16xf32>
    %c0_57 = arith.constant 0 : index
    %59 = memref.load %arg8[%c0_57] : memref<8xf32, #tpu.memory_space<smem>>
    %60 = vector.broadcast %59 : f32 to vector<1x16xf32>
    %61 = arith.addf %58, %60 : vector<1x16xf32>
    %cst_58 = arith.constant 0.000000e+00 : f32
    %62 = vector.broadcast %cst_58 : f32 to vector<1x16xf32>
    %63 = arith.maximumf %61, %62 : vector<1x16xf32>
    %c0_59 = arith.constant 0 : index
    %c1_60 = arith.constant 1 : index
    %64 = memref.load %arg6[%c0_59, %c1_60] : memref<4x8xf32, #tpu.memory_space<smem>>
    %65 = vector.broadcast %64 : f32 to vector<1x16xf32>
    %66 = arith.mulf %65, %7 : vector<1x16xf32>
    %c0_61 = arith.constant 0 : index
    %c1_62 = arith.constant 1 : index
    %67 = memref.load %arg7[%c0_61, %c1_62] : memref<4x8xf32, #tpu.memory_space<smem>>
    %68 = vector.broadcast %67 : f32 to vector<1x16xf32>
    %69 = arith.mulf %68, %9 : vector<1x16xf32>
    %70 = arith.addf %66, %69 : vector<1x16xf32>
    %c1_63 = arith.constant 1 : index
    %c1_64 = arith.constant 1 : index
    %71 = memref.load %arg6[%c1_63, %c1_64] : memref<4x8xf32, #tpu.memory_space<smem>>
    %72 = vector.broadcast %71 : f32 to vector<1x16xf32>
    %73 = arith.mulf %72, %13 : vector<1x16xf32>
    %74 = arith.addf %70, %73 : vector<1x16xf32>
    %c1_65 = arith.constant 1 : index
    %c1_66 = arith.constant 1 : index
    %75 = memref.load %arg7[%c1_65, %c1_66] : memref<4x8xf32, #tpu.memory_space<smem>>
    %76 = vector.broadcast %75 : f32 to vector<1x16xf32>
    %77 = arith.mulf %76, %15 : vector<1x16xf32>
    %78 = arith.addf %74, %77 : vector<1x16xf32>
    %c2_67 = arith.constant 2 : index
    %c1_68 = arith.constant 1 : index
    %79 = memref.load %arg6[%c2_67, %c1_68] : memref<4x8xf32, #tpu.memory_space<smem>>
    %80 = vector.broadcast %79 : f32 to vector<1x16xf32>
    %81 = arith.mulf %80, %19 : vector<1x16xf32>
    %82 = arith.addf %78, %81 : vector<1x16xf32>
    %c2_69 = arith.constant 2 : index
    %c1_70 = arith.constant 1 : index
    %83 = memref.load %arg7[%c2_69, %c1_70] : memref<4x8xf32, #tpu.memory_space<smem>>
    %84 = vector.broadcast %83 : f32 to vector<1x16xf32>
    %85 = arith.mulf %84, %21 : vector<1x16xf32>
    %86 = arith.addf %82, %85 : vector<1x16xf32>
    %c3_71 = arith.constant 3 : index
    %c1_72 = arith.constant 1 : index
    %87 = memref.load %arg6[%c3_71, %c1_72] : memref<4x8xf32, #tpu.memory_space<smem>>
    %88 = vector.broadcast %87 : f32 to vector<1x16xf32>
    %89 = arith.mulf %88, %25 : vector<1x16xf32>
    %90 = arith.addf %86, %89 : vector<1x16xf32>
    %c3_73 = arith.constant 3 : index
    %c1_74 = arith.constant 1 : index
    %91 = memref.load %arg7[%c3_73, %c1_74] : memref<4x8xf32, #tpu.memory_space<smem>>
    %92 = vector.broadcast %91 : f32 to vector<1x16xf32>
    %93 = arith.mulf %92, %27 : vector<1x16xf32>
    %94 = arith.addf %90, %93 : vector<1x16xf32>
    %c1_75 = arith.constant 1 : index
    %95 = memref.load %arg8[%c1_75] : memref<8xf32, #tpu.memory_space<smem>>
    %96 = vector.broadcast %95 : f32 to vector<1x16xf32>
    %97 = arith.addf %94, %96 : vector<1x16xf32>
    %cst_76 = arith.constant 0.000000e+00 : f32
    %98 = vector.broadcast %cst_76 : f32 to vector<1x16xf32>
    %99 = arith.maximumf %97, %98 : vector<1x16xf32>
    %c0_77 = arith.constant 0 : index
    %c2_78 = arith.constant 2 : index
    %100 = memref.load %arg6[%c0_77, %c2_78] : memref<4x8xf32, #tpu.memory_space<smem>>
    %101 = vector.broadcast %100 : f32 to vector<1x16xf32>
    %102 = arith.mulf %101, %7 : vector<1x16xf32>
    %c0_79 = arith.constant 0 : index
    %c2_80 = arith.constant 2 : index
    %103 = memref.load %arg7[%c0_79, %c2_80] : memref<4x8xf32, #tpu.memory_space<smem>>
    %104 = vector.broadcast %103 : f32 to vector<1x16xf32>
    %105 = arith.mulf %104, %9 : vector<1x16xf32>
    %106 = arith.addf %102, %105 : vector<1x16xf32>
    %c1_81 = arith.constant 1 : index
    %c2_82 = arith.constant 2 : index
    %107 = memref.load %arg6[%c1_81, %c2_82] : memref<4x8xf32, #tpu.memory_space<smem>>
    %108 = vector.broadcast %107 : f32 to vector<1x16xf32>
    %109 = arith.mulf %108, %13 : vector<1x16xf32>
    %110 = arith.addf %106, %109 : vector<1x16xf32>
    %c1_83 = arith.constant 1 : index
    %c2_84 = arith.constant 2 : index
    %111 = memref.load %arg7[%c1_83, %c2_84] : memref<4x8xf32, #tpu.memory_space<smem>>
    %112 = vector.broadcast %111 : f32 to vector<1x16xf32>
    %113 = arith.mulf %112, %15 : vector<1x16xf32>
    %114 = arith.addf %110, %113 : vector<1x16xf32>
    %c2_85 = arith.constant 2 : index
    %c2_86 = arith.constant 2 : index
    %115 = memref.load %arg6[%c2_85, %c2_86] : memref<4x8xf32, #tpu.memory_space<smem>>
    %116 = vector.broadcast %115 : f32 to vector<1x16xf32>
    %117 = arith.mulf %116, %19 : vector<1x16xf32>
    %118 = arith.addf %114, %117 : vector<1x16xf32>
    %c2_87 = arith.constant 2 : index
    %c2_88 = arith.constant 2 : index
    %119 = memref.load %arg7[%c2_87, %c2_88] : memref<4x8xf32, #tpu.memory_space<smem>>
    %120 = vector.broadcast %119 : f32 to vector<1x16xf32>
    %121 = arith.mulf %120, %21 : vector<1x16xf32>
    %122 = arith.addf %118, %121 : vector<1x16xf32>
    %c3_89 = arith.constant 3 : index
    %c2_90 = arith.constant 2 : index
    %123 = memref.load %arg6[%c3_89, %c2_90] : memref<4x8xf32, #tpu.memory_space<smem>>
    %124 = vector.broadcast %123 : f32 to vector<1x16xf32>
    %125 = arith.mulf %124, %25 : vector<1x16xf32>
    %126 = arith.addf %122, %125 : vector<1x16xf32>
    %c3_91 = arith.constant 3 : index
    %c2_92 = arith.constant 2 : index
    %127 = memref.load %arg7[%c3_91, %c2_92] : memref<4x8xf32, #tpu.memory_space<smem>>
    %128 = vector.broadcast %127 : f32 to vector<1x16xf32>
    %129 = arith.mulf %128, %27 : vector<1x16xf32>
    %130 = arith.addf %126, %129 : vector<1x16xf32>
    %c2_93 = arith.constant 2 : index
    %131 = memref.load %arg8[%c2_93] : memref<8xf32, #tpu.memory_space<smem>>
    %132 = vector.broadcast %131 : f32 to vector<1x16xf32>
    %133 = arith.addf %130, %132 : vector<1x16xf32>
    %cst_94 = arith.constant 0.000000e+00 : f32
    %134 = vector.broadcast %cst_94 : f32 to vector<1x16xf32>
    %135 = arith.maximumf %133, %134 : vector<1x16xf32>
    %c0_95 = arith.constant 0 : index
    %c3_96 = arith.constant 3 : index
    %136 = memref.load %arg6[%c0_95, %c3_96] : memref<4x8xf32, #tpu.memory_space<smem>>
    %137 = vector.broadcast %136 : f32 to vector<1x16xf32>
    %138 = arith.mulf %137, %7 : vector<1x16xf32>
    %c0_97 = arith.constant 0 : index
    %c3_98 = arith.constant 3 : index
    %139 = memref.load %arg7[%c0_97, %c3_98] : memref<4x8xf32, #tpu.memory_space<smem>>
    %140 = vector.broadcast %139 : f32 to vector<1x16xf32>
    %141 = arith.mulf %140, %9 : vector<1x16xf32>
    %142 = arith.addf %138, %141 : vector<1x16xf32>
    %c1_99 = arith.constant 1 : index
    %c3_100 = arith.constant 3 : index
    %143 = memref.load %arg6[%c1_99, %c3_100] : memref<4x8xf32, #tpu.memory_space<smem>>
    %144 = vector.broadcast %143 : f32 to vector<1x16xf32>
    %145 = arith.mulf %144, %13 : vector<1x16xf32>
    %146 = arith.addf %142, %145 : vector<1x16xf32>
    %c1_101 = arith.constant 1 : index
    %c3_102 = arith.constant 3 : index
    %147 = memref.load %arg7[%c1_101, %c3_102] : memref<4x8xf32, #tpu.memory_space<smem>>
    %148 = vector.broadcast %147 : f32 to vector<1x16xf32>
    %149 = arith.mulf %148, %15 : vector<1x16xf32>
    %150 = arith.addf %146, %149 : vector<1x16xf32>
    %c2_103 = arith.constant 2 : index
    %c3_104 = arith.constant 3 : index
    %151 = memref.load %arg6[%c2_103, %c3_104] : memref<4x8xf32, #tpu.memory_space<smem>>
    %152 = vector.broadcast %151 : f32 to vector<1x16xf32>
    %153 = arith.mulf %152, %19 : vector<1x16xf32>
    %154 = arith.addf %150, %153 : vector<1x16xf32>
    %c2_105 = arith.constant 2 : index
    %c3_106 = arith.constant 3 : index
    %155 = memref.load %arg7[%c2_105, %c3_106] : memref<4x8xf32, #tpu.memory_space<smem>>
    %156 = vector.broadcast %155 : f32 to vector<1x16xf32>
    %157 = arith.mulf %156, %21 : vector<1x16xf32>
    %158 = arith.addf %154, %157 : vector<1x16xf32>
    %c3_107 = arith.constant 3 : index
    %c3_108 = arith.constant 3 : index
    %159 = memref.load %arg6[%c3_107, %c3_108] : memref<4x8xf32, #tpu.memory_space<smem>>
    %160 = vector.broadcast %159 : f32 to vector<1x16xf32>
    %161 = arith.mulf %160, %25 : vector<1x16xf32>
    %162 = arith.addf %158, %161 : vector<1x16xf32>
    %c3_109 = arith.constant 3 : index
    %c3_110 = arith.constant 3 : index
    %163 = memref.load %arg7[%c3_109, %c3_110] : memref<4x8xf32, #tpu.memory_space<smem>>
    %164 = vector.broadcast %163 : f32 to vector<1x16xf32>
    %165 = arith.mulf %164, %27 : vector<1x16xf32>
    %166 = arith.addf %162, %165 : vector<1x16xf32>
    %c3_111 = arith.constant 3 : index
    %167 = memref.load %arg8[%c3_111] : memref<8xf32, #tpu.memory_space<smem>>
    %168 = vector.broadcast %167 : f32 to vector<1x16xf32>
    %169 = arith.addf %166, %168 : vector<1x16xf32>
    %cst_112 = arith.constant 0.000000e+00 : f32
    %170 = vector.broadcast %cst_112 : f32 to vector<1x16xf32>
    %171 = arith.maximumf %169, %170 : vector<1x16xf32>
    %c0_113 = arith.constant 0 : index
    %c4 = arith.constant 4 : index
    %172 = memref.load %arg6[%c0_113, %c4] : memref<4x8xf32, #tpu.memory_space<smem>>
    %173 = vector.broadcast %172 : f32 to vector<1x16xf32>
    %174 = arith.mulf %173, %7 : vector<1x16xf32>
    %c0_114 = arith.constant 0 : index
    %c4_115 = arith.constant 4 : index
    %175 = memref.load %arg7[%c0_114, %c4_115] : memref<4x8xf32, #tpu.memory_space<smem>>
    %176 = vector.broadcast %175 : f32 to vector<1x16xf32>
    %177 = arith.mulf %176, %9 : vector<1x16xf32>
    %178 = arith.addf %174, %177 : vector<1x16xf32>
    %c1_116 = arith.constant 1 : index
    %c4_117 = arith.constant 4 : index
    %179 = memref.load %arg6[%c1_116, %c4_117] : memref<4x8xf32, #tpu.memory_space<smem>>
    %180 = vector.broadcast %179 : f32 to vector<1x16xf32>
    %181 = arith.mulf %180, %13 : vector<1x16xf32>
    %182 = arith.addf %178, %181 : vector<1x16xf32>
    %c1_118 = arith.constant 1 : index
    %c4_119 = arith.constant 4 : index
    %183 = memref.load %arg7[%c1_118, %c4_119] : memref<4x8xf32, #tpu.memory_space<smem>>
    %184 = vector.broadcast %183 : f32 to vector<1x16xf32>
    %185 = arith.mulf %184, %15 : vector<1x16xf32>
    %186 = arith.addf %182, %185 : vector<1x16xf32>
    %c2_120 = arith.constant 2 : index
    %c4_121 = arith.constant 4 : index
    %187 = memref.load %arg6[%c2_120, %c4_121] : memref<4x8xf32, #tpu.memory_space<smem>>
    %188 = vector.broadcast %187 : f32 to vector<1x16xf32>
    %189 = arith.mulf %188, %19 : vector<1x16xf32>
    %190 = arith.addf %186, %189 : vector<1x16xf32>
    %c2_122 = arith.constant 2 : index
    %c4_123 = arith.constant 4 : index
    %191 = memref.load %arg7[%c2_122, %c4_123] : memref<4x8xf32, #tpu.memory_space<smem>>
    %192 = vector.broadcast %191 : f32 to vector<1x16xf32>
    %193 = arith.mulf %192, %21 : vector<1x16xf32>
    %194 = arith.addf %190, %193 : vector<1x16xf32>
    %c3_124 = arith.constant 3 : index
    %c4_125 = arith.constant 4 : index
    %195 = memref.load %arg6[%c3_124, %c4_125] : memref<4x8xf32, #tpu.memory_space<smem>>
    %196 = vector.broadcast %195 : f32 to vector<1x16xf32>
    %197 = arith.mulf %196, %25 : vector<1x16xf32>
    %198 = arith.addf %194, %197 : vector<1x16xf32>
    %c3_126 = arith.constant 3 : index
    %c4_127 = arith.constant 4 : index
    %199 = memref.load %arg7[%c3_126, %c4_127] : memref<4x8xf32, #tpu.memory_space<smem>>
    %200 = vector.broadcast %199 : f32 to vector<1x16xf32>
    %201 = arith.mulf %200, %27 : vector<1x16xf32>
    %202 = arith.addf %198, %201 : vector<1x16xf32>
    %c4_128 = arith.constant 4 : index
    %203 = memref.load %arg8[%c4_128] : memref<8xf32, #tpu.memory_space<smem>>
    %204 = vector.broadcast %203 : f32 to vector<1x16xf32>
    %205 = arith.addf %202, %204 : vector<1x16xf32>
    %cst_129 = arith.constant 0.000000e+00 : f32
    %206 = vector.broadcast %cst_129 : f32 to vector<1x16xf32>
    %207 = arith.maximumf %205, %206 : vector<1x16xf32>
    %c0_130 = arith.constant 0 : index
    %c5 = arith.constant 5 : index
    %208 = memref.load %arg6[%c0_130, %c5] : memref<4x8xf32, #tpu.memory_space<smem>>
    %209 = vector.broadcast %208 : f32 to vector<1x16xf32>
    %210 = arith.mulf %209, %7 : vector<1x16xf32>
    %c0_131 = arith.constant 0 : index
    %c5_132 = arith.constant 5 : index
    %211 = memref.load %arg7[%c0_131, %c5_132] : memref<4x8xf32, #tpu.memory_space<smem>>
    %212 = vector.broadcast %211 : f32 to vector<1x16xf32>
    %213 = arith.mulf %212, %9 : vector<1x16xf32>
    %214 = arith.addf %210, %213 : vector<1x16xf32>
    %c1_133 = arith.constant 1 : index
    %c5_134 = arith.constant 5 : index
    %215 = memref.load %arg6[%c1_133, %c5_134] : memref<4x8xf32, #tpu.memory_space<smem>>
    %216 = vector.broadcast %215 : f32 to vector<1x16xf32>
    %217 = arith.mulf %216, %13 : vector<1x16xf32>
    %218 = arith.addf %214, %217 : vector<1x16xf32>
    %c1_135 = arith.constant 1 : index
    %c5_136 = arith.constant 5 : index
    %219 = memref.load %arg7[%c1_135, %c5_136] : memref<4x8xf32, #tpu.memory_space<smem>>
    %220 = vector.broadcast %219 : f32 to vector<1x16xf32>
    %221 = arith.mulf %220, %15 : vector<1x16xf32>
    %222 = arith.addf %218, %221 : vector<1x16xf32>
    %c2_137 = arith.constant 2 : index
    %c5_138 = arith.constant 5 : index
    %223 = memref.load %arg6[%c2_137, %c5_138] : memref<4x8xf32, #tpu.memory_space<smem>>
    %224 = vector.broadcast %223 : f32 to vector<1x16xf32>
    %225 = arith.mulf %224, %19 : vector<1x16xf32>
    %226 = arith.addf %222, %225 : vector<1x16xf32>
    %c2_139 = arith.constant 2 : index
    %c5_140 = arith.constant 5 : index
    %227 = memref.load %arg7[%c2_139, %c5_140] : memref<4x8xf32, #tpu.memory_space<smem>>
    %228 = vector.broadcast %227 : f32 to vector<1x16xf32>
    %229 = arith.mulf %228, %21 : vector<1x16xf32>
    %230 = arith.addf %226, %229 : vector<1x16xf32>
    %c3_141 = arith.constant 3 : index
    %c5_142 = arith.constant 5 : index
    %231 = memref.load %arg6[%c3_141, %c5_142] : memref<4x8xf32, #tpu.memory_space<smem>>
    %232 = vector.broadcast %231 : f32 to vector<1x16xf32>
    %233 = arith.mulf %232, %25 : vector<1x16xf32>
    %234 = arith.addf %230, %233 : vector<1x16xf32>
    %c3_143 = arith.constant 3 : index
    %c5_144 = arith.constant 5 : index
    %235 = memref.load %arg7[%c3_143, %c5_144] : memref<4x8xf32, #tpu.memory_space<smem>>
    %236 = vector.broadcast %235 : f32 to vector<1x16xf32>
    %237 = arith.mulf %236, %27 : vector<1x16xf32>
    %238 = arith.addf %234, %237 : vector<1x16xf32>
    %c5_145 = arith.constant 5 : index
    %239 = memref.load %arg8[%c5_145] : memref<8xf32, #tpu.memory_space<smem>>
    %240 = vector.broadcast %239 : f32 to vector<1x16xf32>
    %241 = arith.addf %238, %240 : vector<1x16xf32>
    %cst_146 = arith.constant 0.000000e+00 : f32
    %242 = vector.broadcast %cst_146 : f32 to vector<1x16xf32>
    %243 = arith.maximumf %241, %242 : vector<1x16xf32>
    %c0_147 = arith.constant 0 : index
    %c6 = arith.constant 6 : index
    %244 = memref.load %arg6[%c0_147, %c6] : memref<4x8xf32, #tpu.memory_space<smem>>
    %245 = vector.broadcast %244 : f32 to vector<1x16xf32>
    %246 = arith.mulf %245, %7 : vector<1x16xf32>
    %c0_148 = arith.constant 0 : index
    %c6_149 = arith.constant 6 : index
    %247 = memref.load %arg7[%c0_148, %c6_149] : memref<4x8xf32, #tpu.memory_space<smem>>
    %248 = vector.broadcast %247 : f32 to vector<1x16xf32>
    %249 = arith.mulf %248, %9 : vector<1x16xf32>
    %250 = arith.addf %246, %249 : vector<1x16xf32>
    %c1_150 = arith.constant 1 : index
    %c6_151 = arith.constant 6 : index
    %251 = memref.load %arg6[%c1_150, %c6_151] : memref<4x8xf32, #tpu.memory_space<smem>>
    %252 = vector.broadcast %251 : f32 to vector<1x16xf32>
    %253 = arith.mulf %252, %13 : vector<1x16xf32>
    %254 = arith.addf %250, %253 : vector<1x16xf32>
    %c1_152 = arith.constant 1 : index
    %c6_153 = arith.constant 6 : index
    %255 = memref.load %arg7[%c1_152, %c6_153] : memref<4x8xf32, #tpu.memory_space<smem>>
    %256 = vector.broadcast %255 : f32 to vector<1x16xf32>
    %257 = arith.mulf %256, %15 : vector<1x16xf32>
    %258 = arith.addf %254, %257 : vector<1x16xf32>
    %c2_154 = arith.constant 2 : index
    %c6_155 = arith.constant 6 : index
    %259 = memref.load %arg6[%c2_154, %c6_155] : memref<4x8xf32, #tpu.memory_space<smem>>
    %260 = vector.broadcast %259 : f32 to vector<1x16xf32>
    %261 = arith.mulf %260, %19 : vector<1x16xf32>
    %262 = arith.addf %258, %261 : vector<1x16xf32>
    %c2_156 = arith.constant 2 : index
    %c6_157 = arith.constant 6 : index
    %263 = memref.load %arg7[%c2_156, %c6_157] : memref<4x8xf32, #tpu.memory_space<smem>>
    %264 = vector.broadcast %263 : f32 to vector<1x16xf32>
    %265 = arith.mulf %264, %21 : vector<1x16xf32>
    %266 = arith.addf %262, %265 : vector<1x16xf32>
    %c3_158 = arith.constant 3 : index
    %c6_159 = arith.constant 6 : index
    %267 = memref.load %arg6[%c3_158, %c6_159] : memref<4x8xf32, #tpu.memory_space<smem>>
    %268 = vector.broadcast %267 : f32 to vector<1x16xf32>
    %269 = arith.mulf %268, %25 : vector<1x16xf32>
    %270 = arith.addf %266, %269 : vector<1x16xf32>
    %c3_160 = arith.constant 3 : index
    %c6_161 = arith.constant 6 : index
    %271 = memref.load %arg7[%c3_160, %c6_161] : memref<4x8xf32, #tpu.memory_space<smem>>
    %272 = vector.broadcast %271 : f32 to vector<1x16xf32>
    %273 = arith.mulf %272, %27 : vector<1x16xf32>
    %274 = arith.addf %270, %273 : vector<1x16xf32>
    %c6_162 = arith.constant 6 : index
    %275 = memref.load %arg8[%c6_162] : memref<8xf32, #tpu.memory_space<smem>>
    %276 = vector.broadcast %275 : f32 to vector<1x16xf32>
    %277 = arith.addf %274, %276 : vector<1x16xf32>
    %cst_163 = arith.constant 0.000000e+00 : f32
    %278 = vector.broadcast %cst_163 : f32 to vector<1x16xf32>
    %279 = arith.maximumf %277, %278 : vector<1x16xf32>
    %c0_164 = arith.constant 0 : index
    %c7 = arith.constant 7 : index
    %280 = memref.load %arg6[%c0_164, %c7] : memref<4x8xf32, #tpu.memory_space<smem>>
    %281 = vector.broadcast %280 : f32 to vector<1x16xf32>
    %282 = arith.mulf %281, %7 : vector<1x16xf32>
    %c0_165 = arith.constant 0 : index
    %c7_166 = arith.constant 7 : index
    %283 = memref.load %arg7[%c0_165, %c7_166] : memref<4x8xf32, #tpu.memory_space<smem>>
    %284 = vector.broadcast %283 : f32 to vector<1x16xf32>
    %285 = arith.mulf %284, %9 : vector<1x16xf32>
    %286 = arith.addf %282, %285 : vector<1x16xf32>
    %c1_167 = arith.constant 1 : index
    %c7_168 = arith.constant 7 : index
    %287 = memref.load %arg6[%c1_167, %c7_168] : memref<4x8xf32, #tpu.memory_space<smem>>
    %288 = vector.broadcast %287 : f32 to vector<1x16xf32>
    %289 = arith.mulf %288, %13 : vector<1x16xf32>
    %290 = arith.addf %286, %289 : vector<1x16xf32>
    %c1_169 = arith.constant 1 : index
    %c7_170 = arith.constant 7 : index
    %291 = memref.load %arg7[%c1_169, %c7_170] : memref<4x8xf32, #tpu.memory_space<smem>>
    %292 = vector.broadcast %291 : f32 to vector<1x16xf32>
    %293 = arith.mulf %292, %15 : vector<1x16xf32>
    %294 = arith.addf %290, %293 : vector<1x16xf32>
    %c2_171 = arith.constant 2 : index
    %c7_172 = arith.constant 7 : index
    %295 = memref.load %arg6[%c2_171, %c7_172] : memref<4x8xf32, #tpu.memory_space<smem>>
    %296 = vector.broadcast %295 : f32 to vector<1x16xf32>
    %297 = arith.mulf %296, %19 : vector<1x16xf32>
    %298 = arith.addf %294, %297 : vector<1x16xf32>
    %c2_173 = arith.constant 2 : index
    %c7_174 = arith.constant 7 : index
    %299 = memref.load %arg7[%c2_173, %c7_174] : memref<4x8xf32, #tpu.memory_space<smem>>
    %300 = vector.broadcast %299 : f32 to vector<1x16xf32>
    %301 = arith.mulf %300, %21 : vector<1x16xf32>
    %302 = arith.addf %298, %301 : vector<1x16xf32>
    %c3_175 = arith.constant 3 : index
    %c7_176 = arith.constant 7 : index
    %303 = memref.load %arg6[%c3_175, %c7_176] : memref<4x8xf32, #tpu.memory_space<smem>>
    %304 = vector.broadcast %303 : f32 to vector<1x16xf32>
    %305 = arith.mulf %304, %25 : vector<1x16xf32>
    %306 = arith.addf %302, %305 : vector<1x16xf32>
    %c3_177 = arith.constant 3 : index
    %c7_178 = arith.constant 7 : index
    %307 = memref.load %arg7[%c3_177, %c7_178] : memref<4x8xf32, #tpu.memory_space<smem>>
    %308 = vector.broadcast %307 : f32 to vector<1x16xf32>
    %309 = arith.mulf %308, %27 : vector<1x16xf32>
    %310 = arith.addf %306, %309 : vector<1x16xf32>
    %c7_179 = arith.constant 7 : index
    %311 = memref.load %arg8[%c7_179] : memref<8xf32, #tpu.memory_space<smem>>
    %312 = vector.broadcast %311 : f32 to vector<1x16xf32>
    %313 = arith.addf %310, %312 : vector<1x16xf32>
    %cst_180 = arith.constant 0.000000e+00 : f32
    %314 = vector.broadcast %cst_180 : f32 to vector<1x16xf32>
    %315 = arith.maximumf %313, %314 : vector<1x16xf32>
    %c0_181 = arith.constant 0 : index
    %316 = memref.load %arg11[%c0_181] : memref<3xf32, #tpu.memory_space<smem>>
    %c0_182 = arith.constant 0 : index
    %c0_183 = arith.constant 0 : index
    %317 = memref.load %arg9[%c0_182, %c0_183] : memref<8x3xf32, #tpu.memory_space<smem>>
    %318 = vector.broadcast %317 : f32 to vector<1x16xf32>
    %319 = arith.mulf %318, %63 : vector<1x16xf32>
    %320 = vector.broadcast %316 : f32 to vector<1x16xf32>
    %321 = arith.addf %320, %319 : vector<1x16xf32>
    %c1_184 = arith.constant 1 : index
    %c0_185 = arith.constant 0 : index
    %322 = memref.load %arg9[%c1_184, %c0_185] : memref<8x3xf32, #tpu.memory_space<smem>>
    %323 = vector.broadcast %322 : f32 to vector<1x16xf32>
    %324 = arith.mulf %323, %99 : vector<1x16xf32>
    %325 = arith.addf %321, %324 : vector<1x16xf32>
    %c2_186 = arith.constant 2 : index
    %c0_187 = arith.constant 0 : index
    %326 = memref.load %arg9[%c2_186, %c0_187] : memref<8x3xf32, #tpu.memory_space<smem>>
    %327 = vector.broadcast %326 : f32 to vector<1x16xf32>
    %328 = arith.mulf %327, %135 : vector<1x16xf32>
    %329 = arith.addf %325, %328 : vector<1x16xf32>
    %c3_188 = arith.constant 3 : index
    %c0_189 = arith.constant 0 : index
    %330 = memref.load %arg9[%c3_188, %c0_189] : memref<8x3xf32, #tpu.memory_space<smem>>
    %331 = vector.broadcast %330 : f32 to vector<1x16xf32>
    %332 = arith.mulf %331, %171 : vector<1x16xf32>
    %333 = arith.addf %329, %332 : vector<1x16xf32>
    %c4_190 = arith.constant 4 : index
    %c0_191 = arith.constant 0 : index
    %334 = memref.load %arg9[%c4_190, %c0_191] : memref<8x3xf32, #tpu.memory_space<smem>>
    %335 = vector.broadcast %334 : f32 to vector<1x16xf32>
    %336 = arith.mulf %335, %207 : vector<1x16xf32>
    %337 = arith.addf %333, %336 : vector<1x16xf32>
    %c5_192 = arith.constant 5 : index
    %c0_193 = arith.constant 0 : index
    %338 = memref.load %arg9[%c5_192, %c0_193] : memref<8x3xf32, #tpu.memory_space<smem>>
    %339 = vector.broadcast %338 : f32 to vector<1x16xf32>
    %340 = arith.mulf %339, %243 : vector<1x16xf32>
    %341 = arith.addf %337, %340 : vector<1x16xf32>
    %c6_194 = arith.constant 6 : index
    %c0_195 = arith.constant 0 : index
    %342 = memref.load %arg9[%c6_194, %c0_195] : memref<8x3xf32, #tpu.memory_space<smem>>
    %343 = vector.broadcast %342 : f32 to vector<1x16xf32>
    %344 = arith.mulf %343, %279 : vector<1x16xf32>
    %345 = arith.addf %341, %344 : vector<1x16xf32>
    %c7_196 = arith.constant 7 : index
    %c0_197 = arith.constant 0 : index
    %346 = memref.load %arg9[%c7_196, %c0_197] : memref<8x3xf32, #tpu.memory_space<smem>>
    %347 = vector.broadcast %346 : f32 to vector<1x16xf32>
    %348 = arith.mulf %347, %315 : vector<1x16xf32>
    %349 = arith.addf %345, %348 : vector<1x16xf32>
    %c0_198 = arith.constant 0 : index
    %c0_199 = arith.constant 0 : index
    %350 = memref.load %arg10[%c0_198, %c0_199] : memref<4x3xf32, #tpu.memory_space<smem>>
    %351 = vector.broadcast %350 : f32 to vector<1x16x16xf32>
    %352 = arith.mulf %351, %5 : vector<1x16x16xf32>
    %c1_200 = arith.constant 1 : index
    %c0_201 = arith.constant 0 : index
    %353 = memref.load %arg10[%c1_200, %c0_201] : memref<4x3xf32, #tpu.memory_space<smem>>
    %354 = vector.broadcast %353 : f32 to vector<1x16x16xf32>
    %355 = arith.mulf %354, %11 : vector<1x16x16xf32>
    %356 = arith.addf %352, %355 : vector<1x16x16xf32>
    %c2_202 = arith.constant 2 : index
    %c0_203 = arith.constant 0 : index
    %357 = memref.load %arg10[%c2_202, %c0_203] : memref<4x3xf32, #tpu.memory_space<smem>>
    %358 = vector.broadcast %357 : f32 to vector<1x16x16xf32>
    %359 = arith.mulf %358, %17 : vector<1x16x16xf32>
    %360 = arith.addf %356, %359 : vector<1x16x16xf32>
    %c3_204 = arith.constant 3 : index
    %c0_205 = arith.constant 0 : index
    %361 = memref.load %arg10[%c3_204, %c0_205] : memref<4x3xf32, #tpu.memory_space<smem>>
    %362 = vector.broadcast %361 : f32 to vector<1x16x16xf32>
    %363 = arith.mulf %362, %23 : vector<1x16x16xf32>
    %364 = arith.addf %360, %363 : vector<1x16x16xf32>
    %365 = vector.shape_cast %349 : vector<1x16xf32> to vector<1x1x16xf32>
    %366 = vector.broadcast %365 : vector<1x1x16xf32> to vector<1x16x16xf32>
    %367 = arith.addf %366, %364 : vector<1x16x16xf32>
    %cst_206 = arith.constant 0.000000e+00 : f32
    %368 = vector.broadcast %cst_206 : f32 to vector<1x16x16xf32>
    %369 = arith.subf %368, %367 : vector<1x16x16xf32>
    %370 = math.exp %369 : vector<1x16x16xf32>
    %cst_207 = arith.constant 1.000000e+00 : f32
    %371 = vector.broadcast %cst_207 : f32 to vector<1x16x16xf32>
    %372 = arith.addf %371, %370 : vector<1x16x16xf32>
    %cst_208 = arith.constant 1.000000e+00 : f32
    %373 = vector.broadcast %cst_208 : f32 to vector<1x16x16xf32>
    %374 = arith.divf %373, %372 : vector<1x16x16xf32>
    %c0_209 = arith.constant 0 : index
    %c0_210 = arith.constant 0 : index
    %c0_211 = arith.constant 0 : index
    %c0_212 = arith.constant 0 : index
    %c0_213 = arith.constant 0 : index
    %375 = vector.load %arg12[%c0_209, %c0_210, %c0_211, %c0_212, %c0_213] : memref<1x3x1x16x16xf32, #tpu.memory_space<vmem>>, vector<1x1x1x16x16xf32>
    %376 = vector.shape_cast %375 : vector<1x1x1x16x16xf32> to vector<1x16x16xf32>
    %377 = vector.shape_cast %374 : vector<1x16x16xf32> to vector<1x1x1x16x16xf32>
    tpu.vector_store %arg12[%c0_209, %c0_210, %c0_211, %c0_212, %c0_213], %377 {strides = array<i32>} : memref<1x3x1x16x16xf32, #tpu.memory_space<vmem>>, vector<1x1x1x16x16xf32>,
    %c1_214 = arith.constant 1 : index
    %378 = memref.load %arg11[%c1_214] : memref<3xf32, #tpu.memory_space<smem>>
    %c0_215 = arith.constant 0 : index
    %c1_216 = arith.constant 1 : index
    %379 = memref.load %arg9[%c0_215, %c1_216] : memref<8x3xf32, #tpu.memory_space<smem>>
    %380 = vector.broadcast %379 : f32 to vector<1x16xf32>
    %381 = arith.mulf %380, %63 : vector<1x16xf32>
    %382 = vector.broadcast %378 : f32 to vector<1x16xf32>
    %383 = arith.addf %382, %381 : vector<1x16xf32>
    %c1_217 = arith.constant 1 : index
    %c1_218 = arith.constant 1 : index
    %384 = memref.load %arg9[%c1_217, %c1_218] : memref<8x3xf32, #tpu.memory_space<smem>>
    %385 = vector.broadcast %384 : f32 to vector<1x16xf32>
    %386 = arith.mulf %385, %99 : vector<1x16xf32>
    %387 = arith.addf %383, %386 : vector<1x16xf32>
    %c2_219 = arith.constant 2 : index
    %c1_220 = arith.constant 1 : index
    %388 = memref.load %arg9[%c2_219, %c1_220] : memref<8x3xf32, #tpu.memory_space<smem>>
    %389 = vector.broadcast %388 : f32 to vector<1x16xf32>
    %390 = arith.mulf %389, %135 : vector<1x16xf32>
    %391 = arith.addf %387, %390 : vector<1x16xf32>
    %c3_221 = arith.constant 3 : index
    %c1_222 = arith.constant 1 : index
    %392 = memref.load %arg9[%c3_221, %c1_222] : memref<8x3xf32, #tpu.memory_space<smem>>
    %393 = vector.broadcast %392 : f32 to vector<1x16xf32>
    %394 = arith.mulf %393, %171 : vector<1x16xf32>
    %395 = arith.addf %391, %394 : vector<1x16xf32>
    %c4_223 = arith.constant 4 : index
    %c1_224 = arith.constant 1 : index
    %396 = memref.load %arg9[%c4_223, %c1_224] : memref<8x3xf32, #tpu.memory_space<smem>>
    %397 = vector.broadcast %396 : f32 to vector<1x16xf32>
    %398 = arith.mulf %397, %207 : vector<1x16xf32>
    %399 = arith.addf %395, %398 : vector<1x16xf32>
    %c5_225 = arith.constant 5 : index
    %c1_226 = arith.constant 1 : index
    %400 = memref.load %arg9[%c5_225, %c1_226] : memref<8x3xf32, #tpu.memory_space<smem>>
    %401 = vector.broadcast %400 : f32 to vector<1x16xf32>
    %402 = arith.mulf %401, %243 : vector<1x16xf32>
    %403 = arith.addf %399, %402 : vector<1x16xf32>
    %c6_227 = arith.constant 6 : index
    %c1_228 = arith.constant 1 : index
    %404 = memref.load %arg9[%c6_227, %c1_228] : memref<8x3xf32, #tpu.memory_space<smem>>
    %405 = vector.broadcast %404 : f32 to vector<1x16xf32>
    %406 = arith.mulf %405, %279 : vector<1x16xf32>
    %407 = arith.addf %403, %406 : vector<1x16xf32>
    %c7_229 = arith.constant 7 : index
    %c1_230 = arith.constant 1 : index
    %408 = memref.load %arg9[%c7_229, %c1_230] : memref<8x3xf32, #tpu.memory_space<smem>>
    %409 = vector.broadcast %408 : f32 to vector<1x16xf32>
    %410 = arith.mulf %409, %315 : vector<1x16xf32>
    %411 = arith.addf %407, %410 : vector<1x16xf32>
    %c0_231 = arith.constant 0 : index
    %c1_232 = arith.constant 1 : index
    %412 = memref.load %arg10[%c0_231, %c1_232] : memref<4x3xf32, #tpu.memory_space<smem>>
    %413 = vector.broadcast %412 : f32 to vector<1x16x16xf32>
    %414 = arith.mulf %413, %5 : vector<1x16x16xf32>
    %c1_233 = arith.constant 1 : index
    %c1_234 = arith.constant 1 : index
    %415 = memref.load %arg10[%c1_233, %c1_234] : memref<4x3xf32, #tpu.memory_space<smem>>
    %416 = vector.broadcast %415 : f32 to vector<1x16x16xf32>
    %417 = arith.mulf %416, %11 : vector<1x16x16xf32>
    %418 = arith.addf %414, %417 : vector<1x16x16xf32>
    %c2_235 = arith.constant 2 : index
    %c1_236 = arith.constant 1 : index
    %419 = memref.load %arg10[%c2_235, %c1_236] : memref<4x3xf32, #tpu.memory_space<smem>>
    %420 = vector.broadcast %419 : f32 to vector<1x16x16xf32>
    %421 = arith.mulf %420, %17 : vector<1x16x16xf32>
    %422 = arith.addf %418, %421 : vector<1x16x16xf32>
    %c3_237 = arith.constant 3 : index
    %c1_238 = arith.constant 1 : index
    %423 = memref.load %arg10[%c3_237, %c1_238] : memref<4x3xf32, #tpu.memory_space<smem>>
    %424 = vector.broadcast %423 : f32 to vector<1x16x16xf32>
    %425 = arith.mulf %424, %23 : vector<1x16x16xf32>
    %426 = arith.addf %422, %425 : vector<1x16x16xf32>
    %427 = vector.shape_cast %411 : vector<1x16xf32> to vector<1x1x16xf32>
    %428 = vector.broadcast %427 : vector<1x1x16xf32> to vector<1x16x16xf32>
    %429 = arith.addf %428, %426 : vector<1x16x16xf32>
    %cst_239 = arith.constant 0.000000e+00 : f32
    %430 = vector.broadcast %cst_239 : f32 to vector<1x16x16xf32>
    %431 = arith.subf %430, %429 : vector<1x16x16xf32>
    %432 = math.exp %431 : vector<1x16x16xf32>
    %cst_240 = arith.constant 1.000000e+00 : f32
    %433 = vector.broadcast %cst_240 : f32 to vector<1x16x16xf32>
    %434 = arith.addf %433, %432 : vector<1x16x16xf32>
    %cst_241 = arith.constant 1.000000e+00 : f32
    %435 = vector.broadcast %cst_241 : f32 to vector<1x16x16xf32>
    %436 = arith.divf %435, %434 : vector<1x16x16xf32>
    %c0_242 = arith.constant 0 : index
    %c1_243 = arith.constant 1 : index
    %c0_244 = arith.constant 0 : index
    %c0_245 = arith.constant 0 : index
    %c0_246 = arith.constant 0 : index
    %437 = vector.load %arg12[%c0_242, %c1_243, %c0_244, %c0_245, %c0_246] : memref<1x3x1x16x16xf32, #tpu.memory_space<vmem>>, vector<1x1x1x16x16xf32>
    %438 = vector.shape_cast %437 : vector<1x1x1x16x16xf32> to vector<1x16x16xf32>
    %439 = vector.shape_cast %436 : vector<1x16x16xf32> to vector<1x1x1x16x16xf32>
    tpu.vector_store %arg12[%c0_242, %c1_243, %c0_244, %c0_245, %c0_246], %439 {strides = array<i32>} : memref<1x3x1x16x16xf32, #tpu.memory_space<vmem>>, vector<1x1x1x16x16xf32>,
    %c2_247 = arith.constant 2 : index
    %440 = memref.load %arg11[%c2_247] : memref<3xf32, #tpu.memory_space<smem>>
    %c0_248 = arith.constant 0 : index
    %c2_249 = arith.constant 2 : index
    %441 = memref.load %arg9[%c0_248, %c2_249] : memref<8x3xf32, #tpu.memory_space<smem>>
    %442 = vector.broadcast %441 : f32 to vector<1x16xf32>
    %443 = arith.mulf %442, %63 : vector<1x16xf32>
    %444 = vector.broadcast %440 : f32 to vector<1x16xf32>
    %445 = arith.addf %444, %443 : vector<1x16xf32>
    %c1_250 = arith.constant 1 : index
    %c2_251 = arith.constant 2 : index
    %446 = memref.load %arg9[%c1_250, %c2_251] : memref<8x3xf32, #tpu.memory_space<smem>>
    %447 = vector.broadcast %446 : f32 to vector<1x16xf32>
    %448 = arith.mulf %447, %99 : vector<1x16xf32>
    %449 = arith.addf %445, %448 : vector<1x16xf32>
    %c2_252 = arith.constant 2 : index
    %c2_253 = arith.constant 2 : index
    %450 = memref.load %arg9[%c2_252, %c2_253] : memref<8x3xf32, #tpu.memory_space<smem>>
    %451 = vector.broadcast %450 : f32 to vector<1x16xf32>
    %452 = arith.mulf %451, %135 : vector<1x16xf32>
    %453 = arith.addf %449, %452 : vector<1x16xf32>
    %c3_254 = arith.constant 3 : index
    %c2_255 = arith.constant 2 : index
    %454 = memref.load %arg9[%c3_254, %c2_255] : memref<8x3xf32, #tpu.memory_space<smem>>
    %455 = vector.broadcast %454 : f32 to vector<1x16xf32>
    %456 = arith.mulf %455, %171 : vector<1x16xf32>
    %457 = arith.addf %453, %456 : vector<1x16xf32>
    %c4_256 = arith.constant 4 : index
    %c2_257 = arith.constant 2 : index
    %458 = memref.load %arg9[%c4_256, %c2_257] : memref<8x3xf32, #tpu.memory_space<smem>>
    %459 = vector.broadcast %458 : f32 to vector<1x16xf32>
    %460 = arith.mulf %459, %207 : vector<1x16xf32>
    %461 = arith.addf %457, %460 : vector<1x16xf32>
    %c5_258 = arith.constant 5 : index
    %c2_259 = arith.constant 2 : index
    %462 = memref.load %arg9[%c5_258, %c2_259] : memref<8x3xf32, #tpu.memory_space<smem>>
    %463 = vector.broadcast %462 : f32 to vector<1x16xf32>
    %464 = arith.mulf %463, %243 : vector<1x16xf32>
    %465 = arith.addf %461, %464 : vector<1x16xf32>
    %c6_260 = arith.constant 6 : index
    %c2_261 = arith.constant 2 : index
    %466 = memref.load %arg9[%c6_260, %c2_261] : memref<8x3xf32, #tpu.memory_space<smem>>
    %467 = vector.broadcast %466 : f32 to vector<1x16xf32>
    %468 = arith.mulf %467, %279 : vector<1x16xf32>
    %469 = arith.addf %465, %468 : vector<1x16xf32>
    %c7_262 = arith.constant 7 : index
    %c2_263 = arith.constant 2 : index
    %470 = memref.load %arg9[%c7_262, %c2_263] : memref<8x3xf32, #tpu.memory_space<smem>>
    %471 = vector.broadcast %470 : f32 to vector<1x16xf32>
    %472 = arith.mulf %471, %315 : vector<1x16xf32>
    %473 = arith.addf %469, %472 : vector<1x16xf32>
    %c0_264 = arith.constant 0 : index
    %c2_265 = arith.constant 2 : index
    %474 = memref.load %arg10[%c0_264, %c2_265] : memref<4x3xf32, #tpu.memory_space<smem>>
    %475 = vector.broadcast %474 : f32 to vector<1x16x16xf32>
    %476 = arith.mulf %475, %5 : vector<1x16x16xf32>
    %c1_266 = arith.constant 1 : index
    %c2_267 = arith.constant 2 : index
    %477 = memref.load %arg10[%c1_266, %c2_267] : memref<4x3xf32, #tpu.memory_space<smem>>
    %478 = vector.broadcast %477 : f32 to vector<1x16x16xf32>
    %479 = arith.mulf %478, %11 : vector<1x16x16xf32>
    %480 = arith.addf %476, %479 : vector<1x16x16xf32>
    %c2_268 = arith.constant 2 : index
    %c2_269 = arith.constant 2 : index
    %481 = memref.load %arg10[%c2_268, %c2_269] : memref<4x3xf32, #tpu.memory_space<smem>>
    %482 = vector.broadcast %481 : f32 to vector<1x16x16xf32>
    %483 = arith.mulf %482, %17 : vector<1x16x16xf32>
    %484 = arith.addf %480, %483 : vector<1x16x16xf32>
    %c3_270 = arith.constant 3 : index
    %c2_271 = arith.constant 2 : index
    %485 = memref.load %arg10[%c3_270, %c2_271] : memref<4x3xf32, #tpu.memory_space<smem>>
    %486 = vector.broadcast %485 : f32 to vector<1x16x16xf32>
    %487 = arith.mulf %486, %23 : vector<1x16x16xf32>
    %488 = arith.addf %484, %487 : vector<1x16x16xf32>
    %489 = vector.shape_cast %473 : vector<1x16xf32> to vector<1x1x16xf32>
    %490 = vector.broadcast %489 : vector<1x1x16xf32> to vector<1x16x16xf32>
    %491 = arith.addf %490, %488 : vector<1x16x16xf32>
    %cst_272 = arith.constant 0.000000e+00 : f32
    %492 = vector.broadcast %cst_272 : f32 to vector<1x16x16xf32>
    %493 = arith.subf %492, %491 : vector<1x16x16xf32>
    %494 = math.exp %493 : vector<1x16x16xf32>
    %cst_273 = arith.constant 1.000000e+00 : f32
    %495 = vector.broadcast %cst_273 : f32 to vector<1x16x16xf32>
    %496 = arith.addf %495, %494 : vector<1x16x16xf32>
    %cst_274 = arith.constant 1.000000e+00 : f32
    %497 = vector.broadcast %cst_274 : f32 to vector<1x16x16xf32>
    %498 = arith.divf %497, %496 : vector<1x16x16xf32>
    %c0_275 = arith.constant 0 : index
    %c2_276 = arith.constant 2 : index
    %c0_277 = arith.constant 0 : index
    %c0_278 = arith.constant 0 : index
    %c0_279 = arith.constant 0 : index
    %499 = vector.load %arg12[%c0_275, %c2_276, %c0_277, %c0_278, %c0_279] : memref<1x3x1x16x16xf32, #tpu.memory_space<vmem>>, vector<1x1x1x16x16xf32>
    %500 = vector.shape_cast %499 : vector<1x1x1x16x16xf32> to vector<1x16x16xf32>
    %501 = vector.shape_cast %498 : vector<1x16x16xf32> to vector<1x1x1x16x16xf32>
    tpu.vector_store %arg12[%c0_275, %c2_276, %c0_277, %c0_278, %c0_279], %501 {strides = array<i32>} : memref<1x3x1x16x16xf32, #tpu.memory_space<vmem>>, vector<1x1x1x16x16xf32>,
    return
  }
  func.func @transform_0(%arg0: i32, %arg1: i32, %arg2: i32) -> (i32, i32, i32, i32, i32) {
    %c0_i32 = arith.constant 0 : i32
    %c0_i32_0 = arith.constant 0 : i32
    %c0_i32_1 = arith.constant 0 : i32
    return %arg0, %c0_i32, %arg1, %c0_i32_0, %arg2 : i32, i32, i32, i32, i32
  }
  func.func @transform_1(%arg0: i32, %arg1: i32, %arg2: i32) -> (i32, i32, i32, i32, i32) {
    %c0_i32 = arith.constant 0 : i32
    %c0_i32_0 = arith.constant 0 : i32
    %c0_i32_1 = arith.constant 0 : i32
    return %arg0, %c0_i32, %arg1, %c0_i32_0, %arg2 : i32, i32, i32, i32, i32
  }
  func.func @transform_2(%arg0: i32, %arg1: i32, %arg2: i32) -> (i32, i32) {
    %c0_i32 = arith.constant 0 : i32
    %c0_i32_0 = arith.constant 0 : i32
    %c0_i32_1 = arith.constant 0 : i32
    return %c0_i32, %c0_i32_0 : i32, i32
  }
  func.func @transform_3(%arg0: i32, %arg1: i32, %arg2: i32) -> (i32, i32) {
    %c0_i32 = arith.constant 0 : i32
    %c0_i32_0 = arith.constant 0 : i32
    %c0_i32_1 = arith.constant 0 : i32
    return %c0_i32, %c0_i32_0 : i32, i32
  }
  func.func @transform_4(%arg0: i32, %arg1: i32, %arg2: i32) -> (i32, i32) {
    %c0_i32 = arith.constant 0 : i32
    %c0_i32_0 = arith.constant 0 : i32
    %c0_i32_1 = arith.constant 0 : i32
    return %c0_i32, %c0_i32_0 : i32, i32
  }
  func.func @transform_5(%arg0: i32, %arg1: i32, %arg2: i32) -> i32 {
    %c0_i32 = arith.constant 0 : i32
    %c0_i32_0 = arith.constant 0 : i32
    return %c0_i32 : i32
  }
  func.func @transform_6(%arg0: i32, %arg1: i32, %arg2: i32) -> (i32, i32) {
    %c0_i32 = arith.constant 0 : i32
    %c0_i32_0 = arith.constant 0 : i32
    %c0_i32_1 = arith.constant 0 : i32
    return %c0_i32, %c0_i32_0 : i32, i32
  }
  func.func @transform_7(%arg0: i32, %arg1: i32, %arg2: i32) -> (i32, i32) {
    %c0_i32 = arith.constant 0 : i32
    %c0_i32_0 = arith.constant 0 : i32
    %c0_i32_1 = arith.constant 0 : i32
    return %c0_i32, %c0_i32_0 : i32, i32
  }
  func.func @transform_8(%arg0: i32, %arg1: i32, %arg2: i32) -> i32 {
    %c0_i32 = arith.constant 0 : i32
    %c0_i32_0 = arith.constant 0 : i32
    return %c0_i32 : i32
  }
  func.func @transform_9(%arg0: i32, %arg1: i32, %arg2: i32) -> (i32, i32, i32, i32, i32) {
    %c0_i32 = arith.constant 0 : i32
    %c0_i32_0 = arith.constant 0 : i32
    %c0_i32_1 = arith.constant 0 : i32
    return %arg0, %c0_i32, %arg1, %c0_i32_0, %arg2 : i32, i32, i32, i32, i32
  }
}

</mosaic_0001>

<llo_original>
// kernel: tpu_custom_call.1
$region0: #{tpu_custom_call.1}
  #allocation0 [shape = 'u32[]', space=smem, size = 0x4, offset = 0x4, fixed_abs, tag = 'smem constant byte address 0x4 - core index']
  #allocation1 [shape = 'u32[72,128]{1,0:T(1,128)}', space=vmem, size = 0x9000, scoped, tag = 'internal scratch']
  #allocation18 [shape = 's32[]', space=sflag, size = 0x4, offset = 0, fixed_abs, tag = 'sflag constant byte address 0x0 - dummy sync flag']
  #allocation20 [shape = 's32[]', space=sflag, size = 0x4, offset = 0, fixed_abs, tag = 'sflag constant byte address 0x0 - dummy sync flag']
  %s0 = inlined_call_operand.hbm [shape: f32[2,4,8,16,16], index: 0, kind: input, shape index: {}]
  %s1 = inlined_call_operand.hbm [shape: f32[2,4,8,1,16], index: 1, kind: input, shape index: {}]
  %s2 = inlined_call_operand.vmem [shape: f32[16,1], index: 2, kind: input, shape index: {}]
  %s3 = inlined_call_operand.vmem [shape: f32[4,8], index: 3, kind: input, shape index: {}]
  %s4 = inlined_call_operand.vmem [shape: f32[4,8], index: 4, kind: input, shape index: {}]
  %s5 = inlined_call_operand.vmem [shape: f32[8], index: 5, kind: input, shape index: {}]
  %s6 = inlined_call_operand.vmem [shape: f32[8,3], index: 6, kind: input, shape index: {}]
  %s7 = inlined_call_operand.vmem [shape: f32[4,3], index: 7, kind: input, shape index: {}]
  %s8 = inlined_call_operand.vmem [shape: f32[3], index: 8, kind: input, shape index: {}]
  %s9 = inlined_call_operand.hbm [shape: f32[2,3,8,16,16], index: 9, kind: output, shape index: {}]
  %s10 = sld [smem:[#allocation0]]
  $region101: #{tpu_custom_call.1} parent=0
    _
  %s12 = ssub.s32 1, %s10
  %s13 = scalar_select 0, %s12, %s10
  $region1: #{tpu_custom_call.1} parent=0
    #allocation2 [shape = 'u8[65536]{0}', space=vmem, size = 0x10000, scoped, tag = 'input window, operand 0']
    #allocation3 [shape = 's32[2]{0}', space=sflag, size = 0x8, scoped, tag = 'scoped memory for tpu_custom_call.1']
    #allocation4 [shape = 's32[2]{0}', space=sflag, size = 0x8, scoped, tag = 'scoped memory for tpu_custom_call.1']
    #allocation5 [shape = 's32[2]{0}', space=sflag, size = 0x8, scoped, tag = 'scoped memory for tpu_custom_call.1']
    #allocation6 [shape = 'u8[4096]{0}', space=vmem, size = 0x1000, scoped, tag = 'input window, operand 1']
    #allocation7 [shape = 's32[2]{0}', space=sflag, size = 0x8, scoped, tag = 'scoped memory for tpu_custom_call.1']
    #allocation8 [shape = 'u8[2048]{0}', space=smem, size = 0x800, scoped, tag = 'input window, operand 3, single buffered']
    #allocation9 [shape = 'u8[2048]{0}', space=smem, size = 0x800, scoped, tag = 'input window, operand 4, single buffered']
    #allocation10 [shape = 's32[1]{0}', space=sflag, size = 0x4, scoped, tag = 'scoped memory for tpu_custom_call.1']
    #allocation11 [shape = 'u8[512]{0}', space=smem, size = 0x200, scoped, tag = 'input window, operand 5, single buffered']
    #allocation12 [shape = 'u8[4096]{0}', space=smem, size = 0x1000, scoped, tag = 'input window, operand 6, single buffered']
    #allocation13 [shape = 's32[1]{0}', space=sflag, size = 0x4, scoped, tag = 'scoped memory for tpu_custom_call.1']
    #allocation14 [shape = 'u8[2048]{0}', space=smem, size = 0x800, scoped, tag = 'input window, operand 7, single buffered']
    #allocation15 [shape = 'u8[512]{0}', space=smem, size = 0x200, scoped, tag = 'input window, operand 8, single buffered']
    #allocation16 [shape = 's32[1]{0}', space=sflag, size = 0x4, scoped, tag = 'scoped memory for tpu_custom_call.1']
    #allocation17 [shape = 'u8[49152]{0}', space=vmem, size = 0xc000, scoped, tag = 'output window, operand 0']
    %14 = vsyncpa [#allocation3], 0
    %s15 = scalar_lea.sflag [#allocation3], 1
    %16 = vsyncpa %s15, 0
    %17 = vsyncpa [#allocation7], 0
    %s18 = scalar_lea.sflag [#allocation7], 1
    %19 = vsyncpa %s18, 0
    %20 = vsyncpa [#allocation5], 0
    %21 = vsyncpa [#allocation10], 0
    %22 = vsyncpa [#allocation13], 0
    %23 = vsyncpa [#allocation16], 0
    %24 = vsyncpa [#allocation4], 0
    %s25 = scalar_lea.sflag [#allocation4], 1
    %26 = vsyncpa %s25, 0
    loop: start=0, step=1, limit=18
    $region2: #{tpu_custom_call.1} parent=1 // loop_pre_header
      _
    $region3: #{tpu_custom_call.1} parent=1 // loop_header
      %s28 = sphi 0, %s32
      %p29 = scmp.ge.s32.totalorder %s28, 18
      %s35 = sphi 0, %s54
      %s36 = sphi 0, %s50
      %s37 = sphi 0, %s46
      %s38 = sphi 0, %s35
      %s39 = sphi 0, %s36
      %s40 = sphi 0, %s37
      %s41 = sphi 0, %s38
      %s42 = sphi 0, %s39
      %s43 = sphi 0, %s40
      %s61 = sphi 0, %s63
      %s64 = sphi 0, %s61
      %s65 = sphi 0, %s64
      %s81 = sphi 0, %s65
      %s91 = sphi 0, %s93
      %s94 = sphi 0, %s91
      %s95 = sphi 0, %s94
      %s111 = sphi 0, %s95
      %s115 = sphi 0, %s115
      %s117 = sphi 0, %s115
      %s118 = sphi 0, %s117
      %s132 = sphi 0, %s118
      %s136 = sphi 0, %s136
      %s138 = sphi 0, %s136
      %s139 = sphi 0, %s138
      %s153 = sphi 0, %s139
      %s157 = sphi 0, %s157
      %s159 = sphi 0, %s157
      %s160 = sphi 0, %s159
      %s174 = sphi 0, %s160
      %s178 = sphi 0, %s178
      %s180 = sphi 0, %s178
      %s181 = sphi 0, %s180
      %s195 = sphi 0, %s181
      %s199 = sphi 0, %s199
      %s201 = sphi 0, %s199
      %s202 = sphi 0, %s201
      %s216 = sphi 0, %s202
      %s220 = sphi 0, %s220
      %s222 = sphi 0, %s220
      %s223 = sphi 0, %s222
      %s237 = sphi 0, %s223
      %s241 = sphi 0, %s241
      %s243 = sphi 0, %s241
      %s244 = sphi 0, %s243
      %s258 = sphi 0, %s244
      %s268 = sphi 0, %s270
      %s271 = sphi 0, %s268
      %s272 = sphi 0, %s271
      %s288 = sphi 0, %s272
    $region4: #{tpu_custom_call.1} parent=1 // loop_header_branch
      %31 = sbr.rel (%p29) target = $region8
    $region5: #{tpu_custom_call.1} parent=1 // loop_body
      %s33 = ssub.s32 %s28, 1
      %s34 = ssub.s32 %s28, 2
      %s44 = sadd.s32 1, %s37
      %p45 = scmp.ge.s32.totalorder %s44, 1
      %s46 = scalar_select %p45, 0, %s44
      %s47 = sadd.s32 1, %s36
      %s48 = scalar_select %p45, %s47, %s36
      %p49 = scmp.ge.s32.totalorder %s48, 8
      %s50 = scalar_select %p49, 0, %s48
      %s51 = sadd.s32 1, %s35
      %s52 = scalar_select %p49, %s51, %s35
      %p53 = scmp.ge.s32.totalorder %s52, 2
      %s54 = scalar_select %p53, 0, %s52
      %s55 = ssub.s32 %s35, %s54
      %s56 = ssub.s32 %s36, %s50
      %s57 = sor.u32 %s55, %s56
      %s58 = ssub.s32 %s37, %s46
      %s59 = sor.u32 %s57, %s58
      %p60 = scmp.eq.s32.totalorder %s59, 0
      %s62 = sadd.s32 %s61, 1
      %s63 = scalar_select %p60, %s61, %s62
      %p66 = pneg %p60
      %p67 = scmp.eq.s32.totalorder %s28, 15
      %p68 = por %p66, %p67
      %p69 = scmp.ne.s32.totalorder %s61, %s64
      %p70 = scmp.eq.s32.totalorder %s28, 0
      %p71 = por %p69, %p70
      %p72 = scmp.ne.s32.totalorder %s61, %s64
      %p73 = scmp.eq.s32.totalorder %s33, 15
      %p74 = por %p72, %p73
      %p75 = scmp.ne.s32.totalorder %s64, %s65
      %p76 = scmp.eq.s32.totalorder %s33, 0
      %p77 = por %p75, %p76
      %p78 = scmp.ne.s32.totalorder %s64, %s65
      %p79 = scmp.eq.s32.totalorder %s34, 15
      %p80 = por %p78, %p79
      %p82 = scmp.ne.s32.totalorder %s65, %s81
      %p83 = scmp.eq.s32.totalorder %s34, 0
      %p84 = por %p82, %p83
      %s85 = ssub.s32 %s35, %s54
      %s86 = ssub.s32 %s36, %s50
      %s87 = sor.u32 %s85, %s86
      %s88 = ssub.s32 %s37, %s46
      %s89 = sor.u32 %s87, %s88
      %p90 = scmp.eq.s32.totalorder %s89, 0
      %s92 = sadd.s32 %s91, 1
      %s93 = scalar_select %p90, %s91, %s92
      %p96 = pneg %p90
      %p97 = scmp.eq.s32.totalorder %s28, 15
      %p98 = por %p96, %p97
      %p99 = scmp.ne.s32.totalorder %s91, %s94
      %p100 = scmp.eq.s32.totalorder %s28, 0
      %p101 = por %p99, %p100
      %p102 = scmp.ne.s32.totalorder %s91, %s94
      %p103 = scmp.eq.s32.totalorder %s33, 15
      %p104 = por %p102, %p103
      %p105 = scmp.ne.s32.totalorder %s94, %s95
      %p106 = scmp.eq.s32.totalorder %s33, 0
      %p107 = por %p105, %p106
      %p108 = scmp.ne.s32.totalorder %s94, %s95
      %p109 = scmp.eq.s32.totalorder %s34, 15
      %p110 = por %p108, %p109
      %p112 = scmp.ne.s32.totalorder %s95, %s111
      %p113 = scmp.eq.s32.totalorder %s34, 0
      %p114 = por %p112, %p113
      %s116 = sadd.s32 %s115, 1
      %p119 = scmp.eq.s32.totalorder %s28, 15
      %p120 = scmp.ne.s32.totalorder %s115, %s117
      %p121 = scmp.eq.s32.totalorder %s28, 0
      %p122 = por %p120, %p121
      %p123 = scmp.ne.s32.totalorder %s115, %s117
      %p124 = scmp.eq.s32.totalorder %s33, 15
      %p125 = por %p123, %p124
      %p126 = scmp.ne.s32.totalorder %s117, %s118
      %p127 = scmp.eq.s32.totalorder %s33, 0
      %p128 = por %p126, %p127
      %p129 = scmp.ne.s32.totalorder %s117, %s118
      %p130 = scmp.eq.s32.totalorder %s34, 15
      %p131 = por %p129, %p130
      %p133 = scmp.ne.s32.totalorder %s118, %s132
      %p134 = scmp.eq.s32.totalorder %s34, 0
      %p135 = por %p133, %p134
      %s137 = sadd.s32 %s136, 1
      %p140 = scmp.eq.s32.totalorder %s28, 15
      %p141 = scmp.ne.s32.totalorder %s136, %s138
      %p142 = scmp.eq.s32.totalorder %s28, 0
      %p143 = por %p141, %p142
      %p144 = scmp.ne.s32.totalorder %s136, %s138
      %p145 = scmp.eq.s32.totalorder %s33, 15
      %p146 = por %p144, %p145
      %p147 = scmp.ne.s32.totalorder %s138, %s139
      %p148 = scmp.eq.s32.totalorder %s33, 0
      %p149 = por %p147, %p148
      %p150 = scmp.ne.s32.totalorder %s138, %s139
      %p151 = scmp.eq.s32.totalorder %s34, 15
      %p152 = por %p150, %p151
      %p154 = scmp.ne.s32.totalorder %s139, %s153
      %p155 = scmp.eq.s32.totalorder %s34, 0
      %p156 = por %p154, %p155
      %s158 = sadd.s32 %s157, 1
      %p161 = scmp.eq.s32.totalorder %s28, 15
      %p162 = scmp.ne.s32.totalorder %s157, %s159
      %p163 = scmp.eq.s32.totalorder %s28, 0
      %p164 = por %p162, %p163
      %p165 = scmp.ne.s32.totalorder %s157, %s159
      %p166 = scmp.eq.s32.totalorder %s33, 15
      %p167 = por %p165, %p166
      %p168 = scmp.ne.s32.totalorder %s159, %s160
      %p169 = scmp.eq.s32.totalorder %s33, 0
      %p170 = por %p168, %p169
      %p171 = scmp.ne.s32.totalorder %s159, %s160
      %p172 = scmp.eq.s32.totalorder %s34, 15
      %p173 = por %p171, %p172
      %p175 = scmp.ne.s32.totalorder %s160, %s174
      %p176 = scmp.eq.s32.totalorder %s34, 0
      %p177 = por %p175, %p176
      %s179 = sadd.s32 %s178, 1
      %p182 = scmp.eq.s32.totalorder %s28, 15
      %p183 = scmp.ne.s32.totalorder %s178, %s180
      %p184 = scmp.eq.s32.totalorder %s28, 0
      %p185 = por %p183, %p184
      %p186 = scmp.ne.s32.totalorder %s178, %s180
      %p187 = scmp.eq.s32.totalorder %s33, 15
      %p188 = por %p186, %p187
      %p189 = scmp.ne.s32.totalorder %s180, %s181
      %p190 = scmp.eq.s32.totalorder %s33, 0
      %p191 = por %p189, %p190
      %p192 = scmp.ne.s32.totalorder %s180, %s181
      %p193 = scmp.eq.s32.totalorder %s34, 15
      %p194 = por %p192, %p193
      %p196 = scmp.ne.s32.totalorder %s181, %s195
      %p197 = scmp.eq.s32.totalorder %s34, 0
      %p198 = por %p196, %p197
      %s200 = sadd.s32 %s199, 1
      %p203 = scmp.eq.s32.totalorder %s28, 15
      %p204 = scmp.ne.s32.totalorder %s199, %s201
      %p205 = scmp.eq.s32.totalorder %s28, 0
      %p206 = por %p204, %p205
      %p207 = scmp.ne.s32.totalorder %s199, %s201
      %p208 = scmp.eq.s32.totalorder %s33, 15
      %p209 = por %p207, %p208
      %p210 = scmp.ne.s32.totalorder %s201, %s202
      %p211 = scmp.eq.s32.totalorder %s33, 0
      %p212 = por %p210, %p211
      %p213 = scmp.ne.s32.totalorder %s201, %s202
      %p214 = scmp.eq.s32.totalorder %s34, 15
      %p215 = por %p213, %p214
      %p217 = scmp.ne.s32.totalorder %s202, %s216
      %p218 = scmp.eq.s32.totalorder %s34, 0
      %p219 = por %p217, %p218
      %s221 = sadd.s32 %s220, 1
      %p224 = scmp.eq.s32.totalorder %s28, 15
      %p225 = scmp.ne.s32.totalorder %s220, %s222
      %p226 = scmp.eq.s32.totalorder %s28, 0
      %p227 = por %p225, %p226
      %p228 = scmp.ne.s32.totalorder %s220, %s222
      %p229 = scmp.eq.s32.totalorder %s33, 15
      %p230 = por %p228, %p229
      %p231 = scmp.ne.s32.totalorder %s222, %s223
      %p232 = scmp.eq.s32.totalorder %s33, 0
      %p233 = por %p231, %p232
      %p234 = scmp.ne.s32.totalorder %s222, %s223
      %p235 = scmp.eq.s32.totalorder %s34, 15
      %p236 = por %p234, %p235
      %p238 = scmp.ne.s32.totalorder %s223, %s237
      %p239 = scmp.eq.s32.totalorder %s34, 0
      %p240 = por %p238, %p239
      %s242 = sadd.s32 %s241, 1
      %p245 = scmp.eq.s32.totalorder %s28, 15
      %p246 = scmp.ne.s32.totalorder %s241, %s243
      %p247 = scmp.eq.s32.totalorder %s28, 0
      %p248 = por %p246, %p247
      %p249 = scmp.ne.s32.totalorder %s241, %s243
      %p250 = scmp.eq.s32.totalorder %s33, 15
      %p251 = por %p249, %p250
      %p252 = scmp.ne.s32.totalorder %s243, %s244
      %p253 = scmp.eq.s32.totalorder %s33, 0
      %p254 = por %p252, %p253
      %p255 = scmp.ne.s32.totalorder %s243, %s244
      %p256 = scmp.eq.s32.totalorder %s34, 15
      %p257 = por %p255, %p256
      %p259 = scmp.ne.s32.totalorder %s244, %s258
      %p260 = scmp.eq.s32.totalorder %s34, 0
      %p261 = por %p259, %p260
      %s262 = ssub.s32 %s35, %s54
      %s263 = ssub.s32 %s36, %s50
      %s264 = sor.u32 %s262, %s263
      %s265 = ssub.s32 %s37, %s46
      %s266 = sor.u32 %s264, %s265
      %p267 = scmp.eq.s32.totalorder %s266, 0
      %s269 = sadd.s32 %s268, 1
      %s270 = scalar_select %p267, %s268, %s269
      %p273 = pneg %p267
      %p274 = scmp.eq.s32.totalorder %s28, 15
      %p275 = por %p273, %p274
      %p276 = scmp.ne.s32.totalorder %s268, %s271
      %p277 = scmp.eq.s32.totalorder %s28, 0
      %p278 = por %p276, %p277
      %p279 = scmp.ne.s32.totalorder %s268, %s271
      %p280 = scmp.eq.s32.totalorder %s33, 15
      %p281 = por %p279, %p280
      %p282 = scmp.ne.s32.totalorder %s271, %s272
      %p283 = scmp.eq.s32.totalorder %s33, 0
      %p284 = por %p282, %p283
      %p285 = scmp.ne.s32.totalorder %s271, %s272
      %p286 = scmp.eq.s32.totalorder %s34, 15
      %p287 = por %p285, %p286
      %p289 = scmp.ne.s32.totalorder %s272, %s288
      %p290 = scmp.eq.s32.totalorder %s34, 0
      %p291 = por %p289, %p290
      %p292 = scmp.le.s32.totalorder 1, %s28
      %p293 = scmp.lt.s32.totalorder %s28, 17
      %p294 = pnand %p292, %p293
      %p295 = pneg %p294
      // Predicated region
      $region9: #{tpu_custom_call.1} parent=5 // pred_check
        _
      $region10: #{tpu_custom_call.1} parent=5 // pred_check_branch
        %297 = sbr.rel (%p294) target = $region12
      $region11: #{tpu_custom_call.1} parent=5 // pred_region
        %s298 = ssub.s32 %s28, 1
        // Predicated region
        $region13: #{tpu_custom_call.1} parent=11 // pred_check
          %p299 = pneg %p128
        $region14: #{tpu_custom_call.1} parent=11 // pred_check_branch
          %301 = sbr.rel (%p299) target = $region16
        $region15: #{tpu_custom_call.1} parent=11 // pred_region
          _
        $region16: #{tpu_custom_call.1} parent=11 // pred_fallthru
          _
        // Predicated region
        $region17: #{tpu_custom_call.1} parent=11 // pred_check
          %p302 = pneg %p149
        $region18: #{tpu_custom_call.1} parent=11 // pred_check_branch
          %304 = sbr.rel (%p302) target = $region20
        $region19: #{tpu_custom_call.1} parent=11 // pred_region
          %306 = vsyncadd [#allocation5], 0
          %s308 = sshll.u32 %s3, 4
          %s309 = int_to_ptr.vmem [resolvable:$true] %s308
          %311 = dma.vmem_to_smem %s309, 64, [#allocation8], [#allocation5]
        $region20: #{tpu_custom_call.1} parent=11 // pred_fallthru
          _
        // Predicated region
        $region21: #{tpu_custom_call.1} parent=11 // pred_check
          %p312 = pneg %p170
        $region22: #{tpu_custom_call.1} parent=11 // pred_check_branch
          %314 = sbr.rel (%p312) target = $region24
        $region23: #{tpu_custom_call.1} parent=11 // pred_region
          %316 = vsyncadd [#allocation10], 0
          %s318 = sshll.u32 %s4, 4
          %s319 = int_to_ptr.vmem [resolvable:$true] %s318
          %321 = dma.vmem_to_smem %s319, 64, [#allocation9], [#allocation10]
        $region24: #{tpu_custom_call.1} parent=11 // pred_fallthru
          _
        // Predicated region
        $region25: #{tpu_custom_call.1} parent=11 // pred_check
          %p322 = pneg %p191
        $region26: #{tpu_custom_call.1} parent=11 // pred_check_branch
          %324 = sbr.rel (%p322) target = $region28
        $region27: #{tpu_custom_call.1} parent=11 // pred_region
          %326 = vsyncadd [#allocation10], 0
          %s328 = sshll.u32 %s5, 4
          %s329 = int_to_ptr.vmem [resolvable:$true] %s328
          %331 = dma.vmem_to_smem %s329, 16, [#allocation11], [#allocation10]
        $region28: #{tpu_custom_call.1} parent=11 // pred_fallthru
          _
        // Predicated region
        $region29: #{tpu_custom_call.1} parent=11 // pred_check
          %p332 = pneg %p212
        $region30: #{tpu_custom_call.1} parent=11 // pred_check_branch
          %334 = sbr.rel (%p332) target = $region32
        $region31: #{tpu_custom_call.1} parent=11 // pred_region
          %336 = vsyncadd [#allocation13], 0
          %s338 = sshll.u32 %s6, 4
          %s339 = int_to_ptr.vmem [resolvable:$true] %s338
          %341 = dma.vmem_to_smem %s339, 128, [#allocation12], [#allocation13]
        $region32: #{tpu_custom_call.1} parent=11 // pred_fallthru
          _
        // Predicated region
        $region33: #{tpu_custom_call.1} parent=11 // pred_check
          %p342 = pneg %p233
        $region34: #{tpu_custom_call.1} parent=11 // pred_check_branch
          %344 = sbr.rel (%p342) target = $region36
        $region35: #{tpu_custom_call.1} parent=11 // pred_region
          %346 = vsyncadd [#allocation13], 0
          %s348 = sshll.u32 %s7, 4
          %s349 = int_to_ptr.vmem [resolvable:$true] %s348
          %351 = dma.vmem_to_smem %s349, 64, [#allocation14], [#allocation13]
        $region36: #{tpu_custom_call.1} parent=11 // pred_fallthru
          _
        // Predicated region
        $region37: #{tpu_custom_call.1} parent=11 // pred_check
          %p352 = pneg %p254
        $region38: #{tpu_custom_call.1} parent=11 // pred_check_branch
          %354 = sbr.rel (%p352) target = $region40
        $region39: #{tpu_custom_call.1} parent=11 // pred_region
          %356 = vsyncadd [#allocation16], 0
          %s358 = sshll.u32 %s8, 4
          %s359 = int_to_ptr.vmem [resolvable:$true] %s358
          %361 = dma.vmem_to_smem %s359, 16, [#allocation15], [#allocation16]
        $region40: #{tpu_custom_call.1} parent=11 // pred_fallthru
          _
      $region12: #{tpu_custom_call.1} parent=5 // pred_fallthru
        _
      %p362 = scmp.lt.s32.totalorder %s28, 16
      // Predicated region
      $region41: #{tpu_custom_call.1} parent=5 // pred_check
        %p363 = pneg %p362
      $region42: #{tpu_custom_call.1} parent=5 // pred_check_branch
        %365 = sbr.rel (%p363) target = $region44
      $region43: #{tpu_custom_call.1} parent=5 // pred_region
        // Predicated region
        $region45: #{tpu_custom_call.1} parent=43 // pred_check
          %p366 = pneg %p71
        $region46: #{tpu_custom_call.1} parent=43 // pred_check_branch
          %368 = sbr.rel (%p366) target = $region48
        $region47: #{tpu_custom_call.1} parent=43 // pred_region
          #allocation19 [shape = 'u32[6]{0}', space=smem, size = 0x18, scoped, tag = 'DMA stride descriptor']
          %s369 = sand.u32 %s61, 1
          %s370 = scalar_lea.sflag [#allocation3], %s369
          %s371 = sand.u32 %s61, 1
          %s372 = smul.addr %s371, 64
          %s373 = scalar_lea.vmem [#allocation2], %s372
          %375 = vsyncadd %s370, 0
          %s376 = smul.addr %s36, 2
          %s377 = sadd.s32 %s37, %s376
          %s378 = smul.addr %s35, 64
          %s379 = sadd.s32 %s377, %s378
          %s380 = smul.addr %s379, 8
          %s381 = scalar_lea.hbm %s0, %s380
          %s383 = sshll.u32 1, 14
          %s384 = sxor.u32 4294967295, %s383
          %s386 = sld [smem:[#allocation0]]
          %s387 = sadd.s32 2, %s386
          %s389 = sshll.u32 7, 26
          %s390 = sxor.u32 4294967295, %s389
          %s391 = sand.u32 0, %s390
          %s392 = sshll.u32 %s387, 26
          %s393 = sor.u32 %s391, %s392
          %s394 = sshll.u32 %s381, 4
          %s395 = int_to_ptr.hbm [resolvable:$true] %s394
          %s396 = sshll.u32 %s373, 4
          %s397 = int_to_ptr.vmem [resolvable:$true] %s396
          %403 = sst [smem:[#allocation19]] 2048
          %s404 = scalar_lea.smem [#allocation19], 1
          %405 = sst [smem:[%s404]] 256
          %s406 = scalar_lea.smem [#allocation19], 2
          %407 = sst [smem:[%s406]] 2
          %s408 = scalar_lea.smem [#allocation19], 3
          %409 = sst [smem:[%s408]] 128
          %s410 = scalar_lea.smem [#allocation19], 4
          %411 = sst [smem:[%s410]] 128
          %s412 = scalar_lea.smem [#allocation19], 5
          %413 = sst [smem:[%s412]] 8
          %415 = dma.general %s395, 1024, %s397, %s370, [#allocation18], [#allocation19], %s393, 0
        $region48: #{tpu_custom_call.1} parent=43 // pred_fallthru
          _
        // Predicated region
        $region49: #{tpu_custom_call.1} parent=43 // pred_check
          %p416 = pneg %p101
        $region50: #{tpu_custom_call.1} parent=43 // pred_check_branch
          %418 = sbr.rel (%p416) target = $region52
        $region51: #{tpu_custom_call.1} parent=43 // pred_region
          %s419 = sand.u32 %s91, 1
          %s420 = scalar_lea.sflag [#allocation7], %s419
          %s421 = sand.u32 %s91, 1
          %s422 = smul.addr %s421, 4
          %s423 = scalar_lea.vmem [#allocation6], %s422
          %425 = vsyncadd %s420, 0
          %s426 = sadd.s32 %s37, %s36
          %s427 = smul.addr %s35, 32
          %s428 = sadd.s32 %s426, %s427
          %s429 = scalar_lea.hbm %s1, %s428
          %s430 = sshll.u32 %s429, 4
          %s431 = int_to_ptr.hbm [resolvable:$true] %s430
          %s432 = sshll.u32 %s423, 4
          %s433 = int_to_ptr.vmem [resolvable:$true] %s432
          %438 = dma.hbm_to_vmem [thread:$0]  %s431, 64, %s433, %s420, 128, 16, 1
        $region52: #{tpu_custom_call.1} parent=43 // pred_fallthru
          _
      $region44: #{tpu_custom_call.1} parent=5 // pred_fallthru
        _
      %p439 = scmp.le.s32.totalorder 1, %s28
      %p440 = scmp.lt.s32.totalorder %s28, 17
      %p441 = pnand %p439, %p440
      %p442 = pneg %p441
      // Predicated region
      $region53: #{tpu_custom_call.1} parent=5 // pred_check
        _
      $region54: #{tpu_custom_call.1} parent=5 // pred_check_branch
        %444 = sbr.rel (%p441) target = $region56
      $region55: #{tpu_custom_call.1} parent=5 // pred_region
        %s445 = ssub.s32 %s28, 1
        %s446 = sand.u32 %s64, 1
        %s447 = scalar_lea.sflag [#allocation3], %s446
        %s448 = sand.u32 %s64, 1
        %s449 = smul.addr %s448, 64
        %s450 = scalar_lea.vmem [#allocation2], %s449
        // Predicated region
        $region57: #{tpu_custom_call.1} parent=55 // pred_check
          %p451 = pneg %p77
        $region58: #{tpu_custom_call.1} parent=55 // pred_check_branch
          %453 = sbr.rel (%p451) target = $region60
        $region59: #{tpu_custom_call.1} parent=55 // pred_region
          %455 = dma.done %s447, 1024
        $region60: #{tpu_custom_call.1} parent=55 // pred_fallthru
          _
        %s456 = sand.u32 %s94, 1
        %s457 = scalar_lea.sflag [#allocation7], %s456
        %s458 = sand.u32 %s94, 1
        %s459 = smul.addr %s458, 4
        %s460 = scalar_lea.vmem [#allocation6], %s459
        // Predicated region
        $region61: #{tpu_custom_call.1} parent=55 // pred_check
          %p461 = pneg %p107
        $region62: #{tpu_custom_call.1} parent=55 // pred_check_branch
          %463 = sbr.rel (%p461) target = $region64
        $region63: #{tpu_custom_call.1} parent=55 // pred_region
          %465 = dma.done %s457, 64
        $region64: #{tpu_custom_call.1} parent=55 // pred_fallthru
          _
        // Predicated region
        $region65: #{tpu_custom_call.1} parent=55 // pred_check
          %p466 = pneg %p149
        $region66: #{tpu_custom_call.1} parent=55 // pred_check_branch
          %468 = sbr.rel (%p466) target = $region68
        $region67: #{tpu_custom_call.1} parent=55 // pred_region
          %470 = dma.done [#allocation5], 64
        $region68: #{tpu_custom_call.1} parent=55 // pred_fallthru
          _
        // Predicated region
        $region69: #{tpu_custom_call.1} parent=55 // pred_check
          %p471 = pneg %p170
        $region70: #{tpu_custom_call.1} parent=55 // pred_check_branch
          %473 = sbr.rel (%p471) target = $region72
        $region71: #{tpu_custom_call.1} parent=55 // pred_region
          %475 = dma.done [#allocation10], 64
        $region72: #{tpu_custom_call.1} parent=55 // pred_fallthru
          _
        // Predicated region
        $region73: #{tpu_custom_call.1} parent=55 // pred_check
          %p476 = pneg %p191
        $region74: #{tpu_custom_call.1} parent=55 // pred_check_branch
          %478 = sbr.rel (%p476) target = $region76
        $region75: #{tpu_custom_call.1} parent=55 // pred_region
          %480 = dma.done [#allocation10], 16
        $region76: #{tpu_custom_call.1} parent=55 // pred_fallthru
          _
        // Predicated region
        $region77: #{tpu_custom_call.1} parent=55 // pred_check
          %p481 = pneg %p212
        $region78: #{tpu_custom_call.1} parent=55 // pred_check_branch
          %483 = sbr.rel (%p481) target = $region80
        $region79: #{tpu_custom_call.1} parent=55 // pred_region
          %485 = dma.done [#allocation13], 128
        $region80: #{tpu_custom_call.1} parent=55 // pred_fallthru
          _
        // Predicated region
        $region81: #{tpu_custom_call.1} parent=55 // pred_check
          %p486 = pneg %p233
        $region82: #{tpu_custom_call.1} parent=55 // pred_check_branch
          %488 = sbr.rel (%p486) target = $region84
        $region83: #{tpu_custom_call.1} parent=55 // pred_region
          %490 = dma.done [#allocation13], 64
        $region84: #{tpu_custom_call.1} parent=55 // pred_fallthru
          _
        // Predicated region
        $region85: #{tpu_custom_call.1} parent=55 // pred_check
          %p491 = pneg %p254
        $region86: #{tpu_custom_call.1} parent=55 // pred_check_branch
          %493 = sbr.rel (%p491) target = $region88
        $region87: #{tpu_custom_call.1} parent=55 // pred_region
          %495 = dma.done [#allocation16], 16
        $region88: #{tpu_custom_call.1} parent=55 // pred_fallthru
          _
        %496 = sfence
        %s497 = sand.u32 %s64, 1
        %s498 = scalar_lea.sflag [#allocation3], %s497
        %s499 = sand.u32 %s64, 1
        %s500 = smul.addr %s499, 64
        %s501 = scalar_lea.vmem [#allocation2], %s500
        %p502 = pneg %p77
        %p503 = pneg %p74
        %s504 = sand.u32 %s94, 1
        %s505 = scalar_lea.sflag [#allocation7], %s504
        %s506 = sand.u32 %s94, 1
        %s507 = smul.addr %s506, 4
        %s508 = scalar_lea.vmem [#allocation6], %s507
        %p509 = pneg %p107
        %p510 = pneg %p104
        %p511 = pneg %p128
        %p512 = pneg %p125
        %p513 = pneg %p149
        %p514 = pneg %p146
        %p515 = pneg %p170
        %p516 = pneg %p167
        %p517 = pneg %p191
        %p518 = pneg %p188
        %p519 = pneg %p212
        %p520 = pneg %p209
        %p521 = pneg %p233
        %p522 = pneg %p230
        %p523 = pneg %p254
        %p524 = pneg %p251
        %p525 = pneg %p284
        %p526 = pneg %p281
        %s527 = sand.u32 %s271, 1
        %s528 = scalar_lea.sflag [#allocation4], %s527
        %s529 = sand.u32 %s271, 1
        %s530 = smul.addr %s529, 48
        %s531 = scalar_lea.vmem [#allocation17], %s530
        %v532 = vld [vmem:[%s2] sm:$0xff]
        %v533 = vld [vmem:[%s2 + $0x8] sm:$0xff]
        %535 = vset.pattern.permute.xlu0 0
        %536 = vperm.xlu0 %535, %v532
        %v537 = vpop.permute.xlu0 %536
        %540 = vset.pattern.permute.xlu0 0
        %541 = vperm.xlu0 %540, %v533
        %v542 = vpop.permute.xlu0 %541
        %v544 = vld [vmem:[%s450] sm:$0xff]
        %v545 = vld [vmem:[%s450 + $0x8] sm:$0xff]
        %v546 = vmul.f32 %v544, %v537
        %v547 = vmul.f32 %v545, %v542
        %vm548 = vcmask 130048
        %v549 = vsel %vm548, %v546, 0.0
        %v550 = vsel %vm548, %v547, 0.0
        %v551 = vadd.f32 %v549, %v550
        %v552 = vrot.slane %v551, 4
        %v553 = vadd.f32 %v551, %v552
        %v554 = vrot.slane %v553, 2
        %v555 = vadd.f32 %v553, %v554
        %v556 = vrot.slane %v555, 1
        %v557 = vadd.f32 %v555, %v556
        %v558 = vld [vmem:[%s460] sm:$0x1]
        %s559 = scalar_lea.vmem %s450, 16 [#allocation2]
        %v560 = vld [vmem:[%s559] sm:$0xff]
        %v561 = vld [vmem:[%s559 + $0x8] sm:$0xff]
        %v562 = vmul.f32 %v560, %v537
        %v563 = vmul.f32 %v561, %v542
        %v564 = vsel %vm548, %v562, 0.0
        %v565 = vsel %vm548, %v563, 0.0
        %v566 = vadd.f32 %v564, %v565
        %v567 = vrot.slane %v566, 4
        %v568 = vadd.f32 %v566, %v567
        %v569 = vrot.slane %v568, 2
        %v570 = vadd.f32 %v568, %v569
        %v571 = vrot.slane %v570, 1
        %v572 = vadd.f32 %v570, %v571
        %s573 = scalar_lea.vmem %s460, 1 [#allocation6]
        %v574 = vld [vmem:[%s573] sm:$0x1]
        %s575 = scalar_lea.vmem %s450, 32 [#allocation2]
        %v576 = vld [vmem:[%s575] sm:$0xff]
        %v577 = vld [vmem:[%s575 + $0x8] sm:$0xff]
        %v578 = vmul.f32 %v576, %v537
        %v579 = vmul.f32 %v577, %v542
        %v580 = vsel %vm548, %v578, 0.0
        %v581 = vsel %vm548, %v579, 0.0
        %v582 = vadd.f32 %v580, %v581
        %v583 = vrot.slane %v582, 4
        %v584 = vadd.f32 %v582, %v583
        %v585 = vrot.slane %v584, 2
        %v586 = vadd.f32 %v584, %v585
        %v587 = vrot.slane %v586, 1
        %v588 = vadd.f32 %v586, %v587
        %s589 = scalar_lea.vmem %s460, 2 [#allocation6]
        %v590 = vld [vmem:[%s589] sm:$0x1]
        %s591 = scalar_lea.vmem %s450, 48 [#allocation2]
        %v592 = vld [vmem:[%s591] sm:$0xff]
        %v593 = vld [vmem:[%s591 + $0x8] sm:$0xff]
        %v594 = vmul.f32 %v592, %v537
        %v595 = vmul.f32 %v593, %v542
        %v596 = vsel %vm548, %v594, 0.0
        %v597 = vsel %vm548, %v595, 0.0
        %v598 = vadd.f32 %v596, %v597
        %v599 = vrot.slane %v598, 4
        %v600 = vadd.f32 %v598, %v599
        %v601 = vrot.slane %v600, 2
        %v602 = vadd.f32 %v600, %v601
        %v603 = vrot.slane %v602, 1
        %v604 = vadd.f32 %v602, %v603
        %s605 = scalar_lea.vmem %s460, 3 [#allocation6]
        %v606 = vld [vmem:[%s605] sm:$0x1]
        %s607 = sld [smem:[#allocation8]]
        %v608 = vstv %s607
        %v609 = vmul.f32 %v608, %v557
        %s610 = sld [smem:[#allocation9]]
        %v611 = vstv %s610
        %v612 = vmul.f32 %v611, %v558
        %v613 = vadd.f32 %v609, %v612
        %s614 = sld [smem:[#allocation8 + $0x80]]
        %v615 = vstv %s614
        %v616 = vmul.f32 %v615, %v572
        %v617 = vadd.f32 %v613, %v616
        %s618 = sld [smem:[#allocation9 + $0x80]]
        %v619 = vstv %s618
        %v620 = vmul.f32 %v619, %v574
        %v621 = vadd.f32 %v617, %v620
        %s622 = sld [smem:[#allocation8 + $0x100]]
        %v623 = vstv %s622
        %v624 = vmul.f32 %v623, %v588
        %v625 = vadd.f32 %v621, %v624
        %s626 = sld [smem:[#allocation9 + $0x100]]
        %v627 = vstv %s626
        %v628 = vmul.f32 %v627, %v590
        %v629 = vadd.f32 %v625, %v628
        %s630 = sld [smem:[#allocation8 + $0x180]]
        %v631 = vstv %s630
        %v632 = vmul.f32 %v631, %v604
        %v633 = vadd.f32 %v629, %v632
        %s634 = sld [smem:[#allocation9 + $0x180]]
        %v635 = vstv %s634
        %v636 = vmul.f32 %v635, %v606
        %v637 = vadd.f32 %v633, %v636
        %s638 = sld [smem:[#allocation11]]
        %v639 = vstv %s638
        %v640 = vadd.f32 %v637, %v639
        %v641 = vmax.f32 %v640, 0.0
        %s642 = sld [smem:[#allocation8 + $0x1]]
        %v643 = vstv %s642
        %v644 = vmul.f32 %v643, %v557
        %s645 = sld [smem:[#allocation9 + $0x1]]
        %v646 = vstv %s645
        %v647 = vmul.f32 %v646, %v558
        %v648 = vadd.f32 %v644, %v647
        %s649 = sld [smem:[#allocation8 + $0x81]]
        %v650 = vstv %s649
        %v651 = vmul.f32 %v650, %v572
        %v652 = vadd.f32 %v648, %v651
        %s653 = sld [smem:[#allocation9 + $0x81]]
        %v654 = vstv %s653
        %v655 = vmul.f32 %v654, %v574
        %v656 = vadd.f32 %v652, %v655
        %s657 = sld [smem:[#allocation8 + $0x101]]
        %v658 = vstv %s657
        %v659 = vmul.f32 %v658, %v588
        %v660 = vadd.f32 %v656, %v659
        %s661 = sld [smem:[#allocation9 + $0x101]]
        %v662 = vstv %s661
        %v663 = vmul.f32 %v662, %v590
        %v664 = vadd.f32 %v660, %v663
        %s665 = sld [smem:[#allocation8 + $0x181]]
        %v666 = vstv %s665
        %v667 = vmul.f32 %v666, %v604
        %v668 = vadd.f32 %v664, %v667
        %s669 = sld [smem:[#allocation9 + $0x181]]
        %v670 = vstv %s669
        %v671 = vmul.f32 %v670, %v606
        %v672 = vadd.f32 %v668, %v671
        %s673 = sld [smem:[#allocation11 + $0x1]]
        %v674 = vstv %s673
        %v675 = vadd.f32 %v672, %v674
        %v676 = vmax.f32 %v675, 0.0
        %s677 = sld [smem:[#allocation8 + $0x2]]
        %v678 = vstv %s677
        %v679 = vmul.f32 %v678, %v557
        %s680 = sld [smem:[#allocation9 + $0x2]]
        %v681 = vstv %s680
        %v682 = vmul.f32 %v681, %v558
        %v683 = vadd.f32 %v679, %v682
        %s684 = sld [smem:[#allocation8 + $0x82]]
        %v685 = vstv %s684
        %v686 = vmul.f32 %v685, %v572
        %v687 = vadd.f32 %v683, %v686
        %s688 = sld [smem:[#allocation9 + $0x82]]
        %v689 = vstv %s688
        %v690 = vmul.f32 %v689, %v574
        %v691 = vadd.f32 %v687, %v690
        %s692 = sld [smem:[#allocation8 + $0x102]]
        %v693 = vstv %s692
        %v694 = vmul.f32 %v693, %v588
        %v695 = vadd.f32 %v691, %v694
        %s696 = sld [smem:[#allocation9 + $0x102]]
        %v697 = vstv %s696
        %v698 = vmul.f32 %v697, %v590
        %v699 = vadd.f32 %v695, %v698
        %s700 = sld [smem:[#allocation8 + $0x182]]
        %v701 = vstv %s700
        %v702 = vmul.f32 %v701, %v604
        %v703 = vadd.f32 %v699, %v702
        %s704 = sld [smem:[#allocation9 + $0x182]]
        %v705 = vstv %s704
        %v706 = vmul.f32 %v705, %v606
        %v707 = vadd.f32 %v703, %v706
        %s708 = sld [smem:[#allocation11 + $0x2]]
        %v709 = vstv %s708
        %v710 = vadd.f32 %v707, %v709
        %v711 = vmax.f32 %v710, 0.0
        %s712 = sld [smem:[#allocation8 + $0x3]]
        %v713 = vstv %s712
        %v714 = vmul.f32 %v713, %v557
        %s715 = sld [smem:[#allocation9 + $0x3]]
        %v716 = vstv %s715
        %v717 = vmul.f32 %v716, %v558
        %v718 = vadd.f32 %v714, %v717
        %s719 = sld [smem:[#allocation8 + $0x83]]
        %v720 = vstv %s719
        %v721 = vmul.f32 %v720, %v572
        %v722 = vadd.f32 %v718, %v721
        %s723 = sld [smem:[#allocation9 + $0x83]]
        %v724 = vstv %s723
        %v725 = vmul.f32 %v724, %v574
        %v726 = vadd.f32 %v722, %v725
        %s727 = sld [smem:[#allocation8 + $0x103]]
        %v728 = vstv %s727
        %v729 = vmul.f32 %v728, %v588
        %v730 = vadd.f32 %v726, %v729
        %s731 = sld [smem:[#allocation9 + $0x103]]
        %v732 = vstv %s731
        %v733 = vmul.f32 %v732, %v590
        %v734 = vadd.f32 %v730, %v733
        %s735 = sld [smem:[#allocation8 + $0x183]]
        %v736 = vstv %s735
        %v737 = vmul.f32 %v736, %v604
        %v738 = vadd.f32 %v734, %v737
        %s739 = sld [smem:[#allocation9 + $0x183]]
        %v740 = vstv %s739
        %v741 = vmul.f32 %v740, %v606
        %v742 = vadd.f32 %v738, %v741
        %s743 = sld [smem:[#allocation11 + $0x3]]
        %v744 = vstv %s743
        %v745 = vadd.f32 %v742, %v744
        %v746 = vmax.f32 %v745, 0.0
        %s747 = sld [smem:[#allocation8 + $0x4]]
        %v748 = vstv %s747
        %v749 = vmul.f32 %v748, %v557
        %s750 = sld [smem:[#allocation9 + $0x4]]
        %v751 = vstv %s750
        %v752 = vmul.f32 %v751, %v558
        %v753 = vadd.f32 %v749, %v752
        %s754 = sld [smem:[#allocation8 + $0x84]]
        %v755 = vstv %s754
        %v756 = vmul.f32 %v755, %v572
        %v757 = vadd.f32 %v753, %v756
        %s758 = sld [smem:[#allocation9 + $0x84]]
        %v759 = vstv %s758
        %v760 = vmul.f32 %v759, %v574
        %v761 = vadd.f32 %v757, %v760
        %s762 = sld [smem:[#allocation8 + $0x104]]
        %v763 = vstv %s762
        %v764 = vmul.f32 %v763, %v588
        %v765 = vadd.f32 %v761, %v764
        %s766 = sld [smem:[#allocation9 + $0x104]]
        %v767 = vstv %s766
        %v768 = vmul.f32 %v767, %v590
        %v769 = vadd.f32 %v765, %v768
        %s770 = sld [smem:[#allocation8 + $0x184]]
        %v771 = vstv %s770
        %v772 = vmul.f32 %v771, %v604
        %v773 = vadd.f32 %v769, %v772
        %s774 = sld [smem:[#allocation9 + $0x184]]
        %v775 = vstv %s774
        %v776 = vmul.f32 %v775, %v606
        %v777 = vadd.f32 %v773, %v776
        %s778 = sld [smem:[#allocation11 + $0x4]]
        %v779 = vstv %s778
        %v780 = vadd.f32 %v777, %v779
        %v781 = vmax.f32 %v780, 0.0
        %s782 = sld [smem:[#allocation8 + $0x5]]
        %v783 = vstv %s782
        %v784 = vmul.f32 %v783, %v557
        %s785 = sld [smem:[#allocation9 + $0x5]]
        %v786 = vstv %s785
        %v787 = vmul.f32 %v786, %v558
        %v788 = vadd.f32 %v784, %v787
        %s789 = sld [smem:[#allocation8 + $0x85]]
        %v790 = vstv %s789
        %v791 = vmul.f32 %v790, %v572
        %v792 = vadd.f32 %v788, %v791
        %s793 = sld [smem:[#allocation9 + $0x85]]
        %v794 = vstv %s793
        %v795 = vmul.f32 %v794, %v574
        %v796 = vadd.f32 %v792, %v795
        %s797 = sld [smem:[#allocation8 + $0x105]]
        %v798 = vstv %s797
        %v799 = vmul.f32 %v798, %v588
        %v800 = vadd.f32 %v796, %v799
        %s801 = sld [smem:[#allocation9 + $0x105]]
        %v802 = vstv %s801
        %v803 = vmul.f32 %v802, %v590
        %v804 = vadd.f32 %v800, %v803
        %s805 = sld [smem:[#allocation8 + $0x185]]
        %v806 = vstv %s805
        %v807 = vmul.f32 %v806, %v604
        %v808 = vadd.f32 %v804, %v807
        %s809 = sld [smem:[#allocation9 + $0x185]]
        %v810 = vstv %s809
        %v811 = vmul.f32 %v810, %v606
        %v812 = vadd.f32 %v808, %v811
        %s813 = sld [smem:[#allocation11 + $0x5]]
        %v814 = vstv %s813
        %v815 = vadd.f32 %v812, %v814
        %v816 = vmax.f32 %v815, 0.0
        %s817 = sld [smem:[#allocation8 + $0x6]]
        %v818 = vstv %s817
        %v819 = vmul.f32 %v818, %v557
        %s820 = sld [smem:[#allocation9 + $0x6]]
        %v821 = vstv %s820
        %v822 = vmul.f32 %v821, %v558
        %v823 = vadd.f32 %v819, %v822
        %s824 = sld [smem:[#allocation8 + $0x86]]
        %v825 = vstv %s824
        %v826 = vmul.f32 %v825, %v572
        %v827 = vadd.f32 %v823, %v826
        %s828 = sld [smem:[#allocation9 + $0x86]]
        %v829 = vstv %s828
        %v830 = vmul.f32 %v829, %v574
        %v831 = vadd.f32 %v827, %v830
        %s832 = sld [smem:[#allocation8 + $0x106]]
        %v833 = vstv %s832
        %v834 = vmul.f32 %v833, %v588
        %v835 = vadd.f32 %v831, %v834
        %s836 = sld [smem:[#allocation9 + $0x106]]
        %v837 = vstv %s836
        %v838 = vmul.f32 %v837, %v590
        %v839 = vadd.f32 %v835, %v838
        %s840 = sld [smem:[#allocation8 + $0x186]]
        %v841 = vstv %s840
        %v842 = vmul.f32 %v841, %v604
        %v843 = vadd.f32 %v839, %v842
        %s844 = sld [smem:[#allocation9 + $0x186]]
        %v845 = vstv %s844
        %v846 = vmul.f32 %v845, %v606
        %v847 = vadd.f32 %v843, %v846
        %s848 = sld [smem:[#allocation11 + $0x6]]
        %v849 = vstv %s848
        %v850 = vadd.f32 %v847, %v849
        %v851 = vmax.f32 %v850, 0.0
        %s852 = sld [smem:[#allocation8 + $0x7]]
        %v853 = vstv %s852
        %v854 = vmul.f32 %v853, %v557
        %s855 = sld [smem:[#allocation9 + $0x7]]
        %v856 = vstv %s855
        %v857 = vmul.f32 %v856, %v558
        %v858 = vadd.f32 %v854, %v857
        %s859 = sld [smem:[#allocation8 + $0x87]]
        %v860 = vstv %s859
        %v861 = vmul.f32 %v860, %v572
        %v862 = vadd.f32 %v858, %v861
        %s863 = sld [smem:[#allocation9 + $0x87]]
        %v864 = vstv %s863
        %v865 = vmul.f32 %v864, %v574
        %v866 = vadd.f32 %v862, %v865
        %s867 = sld [smem:[#allocation8 + $0x107]]
        %v868 = vstv %s867
        %v869 = vmul.f32 %v868, %v588
        %v870 = vadd.f32 %v866, %v869
        %s871 = sld [smem:[#allocation9 + $0x107]]
        %v872 = vstv %s871
        %v873 = vmul.f32 %v872, %v590
        %v874 = vadd.f32 %v870, %v873
        %s875 = sld [smem:[#allocation8 + $0x187]]
        %v876 = vstv %s875
        %v877 = vmul.f32 %v876, %v604
        %v878 = vadd.f32 %v874, %v877
        %s879 = sld [smem:[#allocation9 + $0x187]]
        %v880 = vstv %s879
        %v881 = vmul.f32 %v880, %v606
        %v882 = vadd.f32 %v878, %v881
        %s883 = sld [smem:[#allocation11 + $0x7]]
        %v884 = vstv %s883
        %v885 = vadd.f32 %v882, %v884
        %v886 = vmax.f32 %v885, 0.0
        %s887 = sld [smem:[#allocation15]]
        %s888 = sld [smem:[#allocation12]]
        %v889 = vstv %s888
        %v890 = vmul.f32 %v889, %v641
        %v891 = vstv %s887
        %v892 = vadd.f32 %v891, %v890
        %s893 = sld [smem:[#allocation12 + $0x80]]
        %v894 = vstv %s893
        %v895 = vmul.f32 %v894, %v676
        %v896 = vadd.f32 %v892, %v895
        %s897 = sld [smem:[#allocation12 + $0x100]]
        %v898 = vstv %s897
        %v899 = vmul.f32 %v898, %v711
        %v900 = vadd.f32 %v896, %v899
        %s901 = sld [smem:[#allocation12 + $0x180]]
        %v902 = vstv %s901
        %v903 = vmul.f32 %v902, %v746
        %v904 = vadd.f32 %v900, %v903
        %s905 = sld [smem:[#allocation12 + $0x200]]
        %v906 = vstv %s905
        %v907 = vmul.f32 %v906, %v781
        %v908 = vadd.f32 %v904, %v907
        %s909 = sld [smem:[#allocation12 + $0x280]]
        %v910 = vstv %s909
        %v911 = vmul.f32 %v910, %v816
        %v912 = vadd.f32 %v908, %v911
        %s913 = sld [smem:[#allocation12 + $0x300]]
        %v914 = vstv %s913
        %v915 = vmul.f32 %v914, %v851
        %v916 = vadd.f32 %v912, %v915
        %s917 = sld [smem:[#allocation12 + $0x380]]
        %v918 = vstv %s917
        %v919 = vmul.f32 %v918, %v886
        %v920 = vadd.f32 %v916, %v919
        %s921 = sld [smem:[#allocation14]]
        %v922 = vstv %s921
        %v923 = vmul.f32 %v922, %v544
        %v924 = vmul.f32 %v922, %v545
        %s925 = sld [smem:[#allocation14 + $0x80]]
        %v926 = vstv %s925
        %v927 = vmul.f32 %v926, %v560
        %v928 = vmul.f32 %v926, %v561
        %v929 = vadd.f32 %v923, %v927
        %v930 = vadd.f32 %v924, %v928
        %s931 = sld [smem:[#allocation14 + $0x100]]
        %v932 = vstv %s931
        %v933 = vmul.f32 %v932, %v576
        %v934 = vmul.f32 %v932, %v577
        %v935 = vadd.f32 %v929, %v933
        %v936 = vadd.f32 %v930, %v934
        %s937 = sld [smem:[#allocation14 + $0x180]]
        %v938 = vstv %s937
        %v939 = vmul.f32 %v938, %v592
        %v940 = vmul.f32 %v938, %v593
        %v941 = vadd.f32 %v935, %v939
        %v942 = vadd.f32 %v936, %v940
        %v943 = vperm.slane %v920, 0
        %v944 = vadd.f32 %v943, %v941
        %v945 = vadd.f32 %v943, %v942
        %v946 = vsub.f32 0.0, %v944
        %v947 = vsub.f32 0.0, %v945
        %v948 = vmul.f32 %v946, 1.442695
        %v949 = vpow.pop %v948
        %v950 = vmul.f32 %v947, 1.442695
        %v951 = vpow.pop %v950
        %v952 = vadd.f32 %v949, 1.0
        %v953 = vadd.f32 %v951, 1.0
        %v954 = vrcp.pop %v952
        %v955 = vmul.f32 %v952, %v954
        %v956 = vsub.f32 1.0, %v955
        %v957 = vmul.f32 %v954, %v956
        %v958 = vadd.f32 %v954, %v957
        %vm959 = vweird.f32 %v952
        %vm960 = vweird.f32 %v954
        %vm961 = vmor %vm959, %vm960
        %v962 = vsel %vm961, %v954, %v958
        %v963 = vand.u32 2147483647, %v952
        %vm964 = vcmp.eq.f32.partialorder %v963, 8.507059e+37
        %v965 = vand.u32 %v952, 2147483648
        %v966 = vor.u32 1.1754944e-38, %v965
        %v967 = vsel %vm964, %v966, %v962
        %v968 = vmul.f32 1.0, %v967
        %v969 = vrcp.pop %v953
        %v970 = vmul.f32 %v953, %v969
        %v971 = vsub.f32 1.0, %v970
        %v972 = vmul.f32 %v969, %v971
        %v973 = vadd.f32 %v969, %v972
        %vm974 = vweird.f32 %v953
        %vm975 = vweird.f32 %v969
        %vm976 = vmor %vm974, %vm975
        %v977 = vsel %vm976, %v969, %v973
        %v978 = vand.u32 2147483647, %v953
        %vm979 = vcmp.eq.f32.partialorder %v978, 8.507059e+37
        %v980 = vand.u32 %v953, 2147483648
        %v981 = vor.u32 1.1754944e-38, %v980
        %v982 = vsel %vm979, %v981, %v977
        %v983 = vmul.f32 1.0, %v982
        %984 = vst.msk [vmem:[%s531] sm:$0xff] %vm548, %v968
        %985 = vst.msk [vmem:[%s531 + $0x8] sm:$0xff] %vm548, %v983
        %s986 = sld [smem:[#allocation15 + $0x1]]
        %s987 = sld [smem:[#allocation12 + $0x1]]
        %v988 = vstv %s987
        %v989 = vmul.f32 %v988, %v641
        %v990 = vstv %s986
        %v991 = vadd.f32 %v990, %v989
        %s992 = sld [smem:[#allocation12 + $0x81]]
        %v993 = vstv %s992
        %v994 = vmul.f32 %v993, %v676
        %v995 = vadd.f32 %v991, %v994
        %s996 = sld [smem:[#allocation12 + $0x101]]
        %v997 = vstv %s996
        %v998 = vmul.f32 %v997, %v711
        %v999 = vadd.f32 %v995, %v998
        %s1000 = sld [smem:[#allocation12 + $0x181]]
        %v1001 = vstv %s1000
        %v1002 = vmul.f32 %v1001, %v746
        %v1003 = vadd.f32 %v999, %v1002
        %s1004 = sld [smem:[#allocation12 + $0x201]]
        %v1005 = vstv %s1004
        %v1006 = vmul.f32 %v1005, %v781
        %v1007 = vadd.f32 %v1003, %v1006
        %s1008 = sld [smem:[#allocation12 + $0x281]]
        %v1009 = vstv %s1008
        %v1010 = vmul.f32 %v1009, %v816
        %v1011 = vadd.f32 %v1007, %v1010
        %s1012 = sld [smem:[#allocation12 + $0x301]]
        %v1013 = vstv %s1012
        %v1014 = vmul.f32 %v1013, %v851
        %v1015 = vadd.f32 %v1011, %v1014
        %s1016 = sld [smem:[#allocation12 + $0x381]]
        %v1017 = vstv %s1016
        %v1018 = vmul.f32 %v1017, %v886
        %v1019 = vadd.f32 %v1015, %v1018
        %s1020 = sld [smem:[#allocation14 + $0x1]]
        %v1021 = vstv %s1020
        %v1022 = vmul.f32 %v1021, %v544
        %v1023 = vmul.f32 %v1021, %v545
        %s1024 = sld [smem:[#allocation14 + $0x81]]
        %v1025 = vstv %s1024
        %v1026 = vmul.f32 %v1025, %v560
        %v1027 = vmul.f32 %v1025, %v561
        %v1028 = vadd.f32 %v1022, %v1026
        %v1029 = vadd.f32 %v1023, %v1027
        %s1030 = sld [smem:[#allocation14 + $0x101]]
        %v1031 = vstv %s1030
        %v1032 = vmul.f32 %v1031, %v576
        %v1033 = vmul.f32 %v1031, %v577
        %v1034 = vadd.f32 %v1028, %v1032
        %v1035 = vadd.f32 %v1029, %v1033
        %s1036 = sld [smem:[#allocation14 + $0x181]]
        %v1037 = vstv %s1036
        %v1038 = vmul.f32 %v1037, %v592
        %v1039 = vmul.f32 %v1037, %v593
        %v1040 = vadd.f32 %v1034, %v1038
        %v1041 = vadd.f32 %v1035, %v1039
        %v1042 = vperm.slane %v1019, 0
        %v1043 = vadd.f32 %v1042, %v1040
        %v1044 = vadd.f32 %v1042, %v1041
        %v1045 = vsub.f32 0.0, %v1043
        %v1046 = vsub.f32 0.0, %v1044
        %v1047 = vmul.f32 %v1045, 1.442695
        %v1048 = vpow.pop %v1047
        %v1049 = vmul.f32 %v1046, 1.442695
        %v1050 = vpow.pop %v1049
        %v1051 = vadd.f32 %v1048, 1.0
        %v1052 = vadd.f32 %v1050, 1.0
        %v1053 = vrcp.pop %v1051
        %v1054 = vmul.f32 %v1051, %v1053
        %v1055 = vsub.f32 1.0, %v1054
        %v1056 = vmul.f32 %v1053, %v1055
        %v1057 = vadd.f32 %v1053, %v1056
        %vm1058 = vweird.f32 %v1051
        %vm1059 = vweird.f32 %v1053
        %vm1060 = vmor %vm1058, %vm1059
        %v1061 = vsel %vm1060, %v1053, %v1057
        %v1062 = vand.u32 2147483647, %v1051
        %vm1063 = vcmp.eq.f32.partialorder %v1062, 8.507059e+37
        %v1064 = vand.u32 %v1051, 2147483648
        %v1065 = vor.u32 1.1754944e-38, %v1064
        %v1066 = vsel %vm1063, %v1065, %v1061
        %v1067 = vmul.f32 1.0, %v1066
        %v1068 = vrcp.pop %v1052
        %v1069 = vmul.f32 %v1052, %v1068
        %v1070 = vsub.f32 1.0, %v1069
        %v1071 = vmul.f32 %v1068, %v1070
        %v1072 = vadd.f32 %v1068, %v1071
        %vm1073 = vweird.f32 %v1052
        %vm1074 = vweird.f32 %v1068
        %vm1075 = vmor %vm1073, %vm1074
        %v1076 = vsel %vm1075, %v1068, %v1072
        %v1077 = vand.u32 2147483647, %v1052
        %vm1078 = vcmp.eq.f32.partialorder %v1077, 8.507059e+37
        %v1079 = vand.u32 %v1052, 2147483648
        %v1080 = vor.u32 1.1754944e-38, %v1079
        %v1081 = vsel %vm1078, %v1080, %v1076
        %v1082 = vmul.f32 1.0, %v1081
        %s1083 = scalar_lea.vmem %s531, 16 [#allocation17]
        %1084 = vst.msk [vmem:[%s1083] sm:$0xff] %vm548, %v1067
        %1085 = vst.msk [vmem:[%s1083 + $0x8] sm:$0xff] %vm548, %v1082
        %s1086 = sld [smem:[#allocation15 + $0x2]]
        %s1087 = sld [smem:[#allocation12 + $0x2]]
        %v1088 = vstv %s1087
        %v1089 = vmul.f32 %v1088, %v641
        %v1090 = vstv %s1086
        %v1091 = vadd.f32 %v1090, %v1089
        %s1092 = sld [smem:[#allocation12 + $0x82]]
        %v1093 = vstv %s1092
        %v1094 = vmul.f32 %v1093, %v676
        %v1095 = vadd.f32 %v1091, %v1094
        %s1096 = sld [smem:[#allocation12 + $0x102]]
        %v1097 = vstv %s1096
        %v1098 = vmul.f32 %v1097, %v711
        %v1099 = vadd.f32 %v1095, %v1098
        %s1100 = sld [smem:[#allocation12 + $0x182]]
        %v1101 = vstv %s1100
        %v1102 = vmul.f32 %v1101, %v746
        %v1103 = vadd.f32 %v1099, %v1102
        %s1104 = sld [smem:[#allocation12 + $0x202]]
        %v1105 = vstv %s1104
        %v1106 = vmul.f32 %v1105, %v781
        %v1107 = vadd.f32 %v1103, %v1106
        %s1108 = sld [smem:[#allocation12 + $0x282]]
        %v1109 = vstv %s1108
        %v1110 = vmul.f32 %v1109, %v816
        %v1111 = vadd.f32 %v1107, %v1110
        %s1112 = sld [smem:[#allocation12 + $0x302]]
        %v1113 = vstv %s1112
        %v1114 = vmul.f32 %v1113, %v851
        %v1115 = vadd.f32 %v1111, %v1114
        %s1116 = sld [smem:[#allocation12 + $0x382]]
        %v1117 = vstv %s1116
        %v1118 = vmul.f32 %v1117, %v886
        %v1119 = vadd.f32 %v1115, %v1118
        %s1120 = sld [smem:[#allocation14 + $0x2]]
        %v1121 = vstv %s1120
        %v1122 = vmul.f32 %v1121, %v544
        %v1123 = vmul.f32 %v1121, %v545
        %s1124 = sld [smem:[#allocation14 + $0x82]]
        %v1125 = vstv %s1124
        %v1126 = vmul.f32 %v1125, %v560
        %v1127 = vmul.f32 %v1125, %v561
        %v1128 = vadd.f32 %v1122, %v1126
        %v1129 = vadd.f32 %v1123, %v1127
        %s1130 = sld [smem:[#allocation14 + $0x102]]
        %v1131 = vstv %s1130
        %v1132 = vmul.f32 %v1131, %v576
        %v1133 = vmul.f32 %v1131, %v577
        %v1134 = vadd.f32 %v1128, %v1132
        %v1135 = vadd.f32 %v1129, %v1133
        %s1136 = sld [smem:[#allocation14 + $0x182]]
        %v1137 = vstv %s1136
        %v1138 = vmul.f32 %v1137, %v592
        %v1139 = vmul.f32 %v1137, %v593
        %v1140 = vadd.f32 %v1134, %v1138
        %v1141 = vadd.f32 %v1135, %v1139
        %v1142 = vperm.slane %v1119, 0
        %v1143 = vadd.f32 %v1142, %v1140
        %v1144 = vadd.f32 %v1142, %v1141
        %v1145 = vsub.f32 0.0, %v1143
        %v1146 = vsub.f32 0.0, %v1144
        %v1147 = vmul.f32 %v1145, 1.442695
        %v1148 = vpow.pop %v1147
        %v1149 = vmul.f32 %v1146, 1.442695
        %v1150 = vpow.pop %v1149
        %v1151 = vadd.f32 %v1148, 1.0
        %v1152 = vadd.f32 %v1150, 1.0
        %v1153 = vrcp.pop %v1151
        %v1154 = vmul.f32 %v1151, %v1153
        %v1155 = vsub.f32 1.0, %v1154
        %v1156 = vmul.f32 %v1153, %v1155
        %v1157 = vadd.f32 %v1153, %v1156
        %vm1158 = vweird.f32 %v1151
        %vm1159 = vweird.f32 %v1153
        %vm1160 = vmor %vm1158, %vm1159
        %v1161 = vsel %vm1160, %v1153, %v1157
        %v1162 = vand.u32 2147483647, %v1151
        %vm1163 = vcmp.eq.f32.partialorder %v1162, 8.507059e+37
        %v1164 = vand.u32 %v1151, 2147483648
        %v1165 = vor.u32 1.1754944e-38, %v1164
        %v1166 = vsel %vm1163, %v1165, %v1161
        %v1167 = vmul.f32 1.0, %v1166
        %v1168 = vrcp.pop %v1152
        %v1169 = vmul.f32 %v1152, %v1168
        %v1170 = vsub.f32 1.0, %v1169
        %v1171 = vmul.f32 %v1168, %v1170
        %v1172 = vadd.f32 %v1168, %v1171
        %vm1173 = vweird.f32 %v1152
        %vm1174 = vweird.f32 %v1168
        %vm1175 = vmor %vm1173, %vm1174
        %v1176 = vsel %vm1175, %v1168, %v1172
        %v1177 = vand.u32 2147483647, %v1152
        %vm1178 = vcmp.eq.f32.partialorder %v1177, 8.507059e+37
        %v1179 = vand.u32 %v1152, 2147483648
        %v1180 = vor.u32 1.1754944e-38, %v1179
        %v1181 = vsel %vm1178, %v1180, %v1176
        %v1182 = vmul.f32 1.0, %v1181
        %s1183 = scalar_lea.vmem %s531, 32 [#allocation17]
        %1184 = vst.msk [vmem:[%s1183] sm:$0xff] %vm548, %v1167
        %1185 = vst.msk [vmem:[%s1183 + $0x8] sm:$0xff] %vm548, %v1182
        %s1186 = sand.u32 %s271, 1
        %s1187 = scalar_lea.sflag [#allocation4], %s1186
        %s1188 = sand.u32 %s271, 1
        %s1189 = smul.addr %s1188, 48
        %s1190 = scalar_lea.vmem [#allocation17], %s1189
        // Predicated region
        $region89: #{tpu_custom_call.1} parent=55 // pred_check
          %p1191 = pneg %p281
        $region90: #{tpu_custom_call.1} parent=55 // pred_check_branch
          %1193 = sbr.rel (%p1191) target = $region92
        $region91: #{tpu_custom_call.1} parent=55 // pred_region
          #allocation21 [shape = 'u32[6]{0}', space=smem, size = 0x18, scoped, tag = 'DMA stride descriptor']
          %1195 = vsyncadd %s1187, 0
          %s1196 = smul.addr %s39, 2
          %s1197 = sadd.s32 %s40, %s1196
          %s1198 = smul.addr %s38, 48
          %s1199 = sadd.s32 %s1197, %s1198
          %s1200 = smul.addr %s1199, 8
          %s1201 = scalar_lea.hbm %s9, %s1200
          %s1203 = sshll.u32 1, 14
          %s1204 = sxor.u32 4294967295, %s1203
          %s1207 = sshll.u32 7, 18
          %s1208 = sxor.u32 4294967295, %s1207
          %s1209 = sand.u32 0, %s1208
          %s1211 = sor.u32 %s1209, 0
          %s1212 = sshll.u32 %s1190, 4
          %s1213 = int_to_ptr.vmem [resolvable:$true] %s1212
          %s1214 = sshll.u32 %s1201, 4
          %s1215 = int_to_ptr.hbm [resolvable:$true] %s1214
          %1221 = sst [smem:[#allocation21]] 256
          %s1222 = scalar_lea.smem [#allocation21], 1
          %1223 = sst [smem:[%s1222]] 2048
          %s1224 = scalar_lea.smem [#allocation21], 2
          %1225 = sst [smem:[%s1224]] 2
          %s1226 = scalar_lea.smem [#allocation21], 3
          %1227 = sst [smem:[%s1226]] 128
          %s1228 = scalar_lea.smem [#allocation21], 4
          %1229 = sst [smem:[%s1228]] 128
          %s1230 = scalar_lea.smem [#allocation21], 5
          %1231 = sst [smem:[%s1230]] 8
          %1233 = dma.general %s1213, 768, %s1215, %s1187, [#allocation20], [#allocation21], %s1211, 0
        $region92: #{tpu_custom_call.1} parent=55 // pred_fallthru
          _
      $region56: #{tpu_custom_call.1} parent=5 // pred_fallthru
        _
      %p1234 = scmp.le.s32.totalorder 2, %s28
      // Predicated region
      $region93: #{tpu_custom_call.1} parent=5 // pred_check
        %p1235 = pneg %p1234
      $region94: #{tpu_custom_call.1} parent=5 // pred_check_branch
        %1237 = sbr.rel (%p1235) target = $region96
      $region95: #{tpu_custom_call.1} parent=5 // pred_region
        %s1238 = ssub.s32 %s28, 2
        // Predicated region
        $region97: #{tpu_custom_call.1} parent=95 // pred_check
          %p1239 = pneg %p287
        $region98: #{tpu_custom_call.1} parent=95 // pred_check_branch
          %1241 = sbr.rel (%p1239) target = $region100
        $region99: #{tpu_custom_call.1} parent=95 // pred_region
          %s1242 = sand.u32 %s272, 1
          %s1243 = scalar_lea.sflag [#allocation4], %s1242
          %s1244 = sand.u32 %s272, 1
          %s1245 = smul.addr %s1244, 48
          %s1246 = scalar_lea.vmem [#allocation17], %s1245
          %1248 = dma.done %s1243, 768
        $region100: #{tpu_custom_call.1} parent=95 // pred_fallthru
          _
      $region96: #{tpu_custom_call.1} parent=5 // pred_fallthru
        _
    $region6: #{tpu_custom_call.1} parent=1 // loop_footer
      %s32 = sadd.s32 1, %s28
    $region7: #{tpu_custom_call.1} parent=1 // loop_footer_branch
      %27 = sbr.rel target = $region3
    $region8: #{tpu_custom_call.1} parent=1 // loop_exit
      _
    %1249 = vsyncpa [#allocation3], 1
    %s1250 = scalar_lea.sflag [#allocation3], 1
    %1251 = vsyncpa %s1250, 1
    %1252 = vsyncpa [#allocation7], 1
    %s1253 = scalar_lea.sflag [#allocation7], 1
    %1254 = vsyncpa %s1253, 1
    %1255 = vsyncpa [#allocation4], 1
    %s1256 = scalar_lea.sflag [#allocation4], 1
    %1257 = vsyncpa %s1256, 1
    %1258 = vsyncpa [#allocation5], 1
    %s1259 = scalar_lea.sflag [#allocation5], 1
    %1260 = vsyncpa %s1259, 1
    %1261 = vsyncpa [#allocation10], 1
    %1262 = vsyncpa [#allocation13], 1
    %1263 = vsyncpa [#allocation16], 1

</llo_original>
